<compile_context>
chip_gen: v7x
topology: tpu7x:2x2x1
jax: 0.10.0
libtpu: 0.0.40
codegen_flags: <defaults>
</compile_context>

<pallas_src>
import functools
import math

import jax
import jax.numpy as jnp
from jax.experimental import pallas as pl
from jax.experimental.pallas import tpu as pltpu

N_HEADS = 4          # hard-coded to 4 inside Removal / Insertion
N_SEL = 4            # selection-signature feature count
SEL_PAD = 8          # sel features padded to 8 (sublane/lane friendly)
FF_DIM = 32          # agg MLP hidden dims (MLP(n_heads+4, 32, 32, 1, 0))


def _round_up(x, m):
    return ((x + m - 1) // m) * m


def _vmem_capacity_bytes():
    try:
        info = pltpu.get_tpu_info()
        cap = getattr(info, "vmem_capacity_bytes", None)
        if cap:
            return int(cap)
    except Exception:
        pass
    return 64 * 1024 * 1024      # conservative fallback: v7x per-TensorCore VMEM


def _choose_batch_block(bs, fs_c, daug, dim4, w_lanes, fs_pad, budget):
    """Pick the batch block from a VMEM budget (inputs double-buffered + f32
    intermediates), keeping it a multiple of 8 and >=4 grid steps for large bs."""
    ff2 = 2 * FF_DIM
    per_row = (fs_c * (4 * daug            # x_aug bf16, double buffered
                       + 12 * w_lanes      # x_kq / prod f32 + bf16 copy
                       + 12 * ff2          # h1 / h2 f32 + bf16 copies
                       + 32)               # logit / scores / slack
               + 4 * dim4 + 8 * fs_pad)
    blk = max(8, (budget // max(per_row, 1)) // 8 * 8)
    if bs > 8:
        # keep >= 4 grid steps so both v7x TensorCores get a pipelined loop
        blk = min(blk, max(8, _round_up(pl.cdiv(bs, 4), 8)))
    blk = min(blk, _round_up(bs, 8))
    return max(8, blk)


# ----------------------------------------------------------------------------
# Pallas kernel: one batch block per grid step, both branches fused.
# ----------------------------------------------------------------------------
def _score_kernel(fs_pad, v_range,
                  pool_ref, x_ref, wx_ref, wug_ref, w1_ref, w2_ref,
                  w3g_ref, b3_ref, bias_ref, out_ref):
    f32 = jnp.float32
    blk, fs_c, daug = x_ref.shape
    w_lanes = wx_ref.shape[1]                 # 2*hk2 + SEL_PAD
    hk2 = (w_lanes - SEL_PAD) // 2
    ff2 = w2_ref.shape[1]
    cdt = x_ref.dtype                         # MXU operand dtype (bf16 or f32)

    # per-batch pooled projections: multiplicative user term + additive graph term
    pool = pool_ref[...]                                              # (blk, 4*dim)
    u_raw = jnp.dot(pool, wug_ref[0], preferred_element_type=f32)     # (blk, W)
    g_add = jnp.dot(pool, wug_ref[1], preferred_element_type=f32)     # (blk, W)
    lane = jax.lax.broadcasted_iota(jnp.int32, (1, w_lanes), 1)
    u_mul = jnp.where(lane >= 2 * hk2, 1.0, u_raw)   # carried sel lanes pass through

    # node projections for BOTH branches (lane-stacked) + carried sel lanes,
    # computed on a (blk*fs, daug) slab to fill the MXU M dimension.
    x2 = x_ref[...].reshape(blk * fs_c, daug)
    x_kq = jnp.dot(x2, wx_ref[...], preferred_element_type=f32)       # (blk*fs, W)
    x_kq = x_kq.reshape(blk, fs_c, w_lanes)
    prod = (x_kq + g_add[:, None, :]) * u_mul[:, None, :]             # f32
    prod = prod.reshape(blk * fs_c, w_lanes).astype(cdt)

    # agg MLP, both branches block-diagonal; compat + sel + bias fused in w1.
    bias = bias_ref[...]                                              # (8, ff2) f32
    h1 = jnp.maximum(
        jnp.dot(prod, w1_ref[...], preferred_element_type=f32) + bias[0:1, :], 0.0)
    h2 = jnp.maximum(
        jnp.dot(h1.astype(cdt), w2_ref[...], preferred_element_type=f32)
        + bias[1:2, :], 0.0)

    # per-row final projection: w3g already carries the branch gate per row.
    h2 = h2.reshape(blk, fs_c, ff2)
    logit = jnp.sum(h2 * w3g_ref[...][None, :, :], axis=-1) + b3_ref[...]   # (blk, fs_c)
    scores = jnp.tanh(logit) * v_range

    if fs_pad > fs_c:   # lane-dense (128-multiple) unmasked store
        scores = jnp.concatenate(
            [scores, jnp.zeros((blk, fs_pad - fs_c), f32)], axis=-1)
    out_ref[...] = scores


def _score_pallas(pool, x_aug, wpack, w3g, b3v, v_range):
    bs, fs_c, daug = x_aug.shape
    dim4 = pool.shape[-1]
    w_lanes = wpack['wx'].shape[-1]
    fs_pad = _round_up(fs_c, 128)

    vmem_cap = _vmem_capacity_bytes()
    budget = min(vmem_cap // 2, 40 * 1024 * 1024)
    blk = _choose_batch_block(bs, fs_c, daug, dim4, w_lanes, fs_pad, budget)
    bs_pad = _round_up(bs, blk)
    if bs_pad != bs:
        pool = jnp.pad(pool, ((0, bs_pad - bs), (0, 0)))
        x_aug = jnp.pad(x_aug, ((0, bs_pad - bs), (0, 0), (0, 0)))

    kernel = functools.partial(_score_kernel, fs_pad, float(v_range))

    def wspec(a):
        nd = a.ndim
        return pl.BlockSpec(a.shape, lambda b, _nd=nd: (0,) * _nd)

    vmem_limit = int(min(vmem_cap * 3 // 4, budget + (16 << 20)))

    out = pl.pallas_call(
        kernel,
        out_shape=jax.ShapeDtypeStruct((bs_pad, fs_pad), jnp.float32),
        grid=(bs_pad // blk,),
        in_specs=[
            pl.BlockSpec((blk, dim4), lambda b: (b, 0)),
            pl.BlockSpec((blk, fs_c, daug), lambda b: (b, 0, 0)),
            wspec(wpack['wx']), wspec(wpack['wug']), wspec(wpack['w1']),
            wspec(wpack['w2']), wspec(w3g), wspec(b3v), wspec(wpack['bias']),
        ],
        out_specs=pl.BlockSpec((blk, fs_pad), lambda b: (b, 0)),
        compiler_params=pltpu.CompilerParams(
            dimension_semantics=("parallel",),
            vmem_limit_bytes=vmem_limit),
    )(pool, x_aug, wpack['wx'], wpack['wug'], wpack['w1'], wpack['w2'],
      w3g, b3v, wpack['bias'])
    return out[:bs]


# ----------------------------------------------------------------------------
# Parameter construction (shapes per the PyTorch __init__) and host-side
# algebraic weight folding / branch stacking.
# ----------------------------------------------------------------------------
def init_params(key, dim):
    kd = dim // N_HEADS
    keys = iter(jax.random.split(key, 64))

    def unif(shape, fan):
        s = 1.0 / math.sqrt(fan)
        return jax.random.uniform(next(keys), shape, jnp.float32, -s, s)

    # decoder-level projections (Linear(dim, dim, bias=False)), stored as W^T
    proj = {name: unif((dim, dim), dim)
            for name in ['node_u', 'graph_u', 'node_p', 'graph_p',
                         'node_q', 'graph_q']}

    def head_w():
        w = unif((N_HEADS, dim, kd), kd)                 # (H, dim, kd)
        return jnp.transpose(w, (1, 0, 2)).reshape(dim, N_HEADS * kd)

    def mlp():
        in_dim = N_HEADS + N_SEL
        return dict(
            w1=unif((in_dim, FF_DIM), in_dim), b1=unif((1, FF_DIM), FF_DIM),
            w2=unif((FF_DIM, FF_DIM), FF_DIM), b2=unif((1, FF_DIM), FF_DIM),
            w3=unif((FF_DIM, 1), FF_DIM), b3=unif((1, 1), 1))

    def branch(node_x, graph_x):
        return dict(
            wnu=proj['node_u'], wgu=proj['graph_u'],
            wnx=proj[node_x], wgx=proj[graph_x],
            wqu=head_w(), wku=head_w(), wqx=head_w(), wkx=head_w(),
            **mlp())

    return dict(removal=branch('node_p', 'graph_p'),
                insertion=branch('node_q', 'graph_q'))


def pack_decoder_weights(params, dim, dtype=jnp.bfloat16):
    """Exact host-side folding of projections / hmask / norm, with BOTH
    branches stacked along the lane axis (block structured)."""
    f32 = jnp.float32
    kd = dim // N_HEADS
    hk2 = 2 * N_HEADS * kd                  # = 2*dim
    w_lanes = 2 * hk2 + SEL_PAD
    ff2 = 2 * FF_DIM
    norm = 1.0 / math.sqrt(kd)
    hmask = jnp.repeat(jnp.eye(N_HEADS, dtype=f32), kd, axis=0)       # (hk, H)
    hmask2 = jnp.concatenate([hmask, hmask], axis=0)                  # (hk2, H)

    def fold(bp):
        wkq_x = jnp.concatenate([bp['wkx'], bp['wqx']], axis=-1)      # (dim, hk2) [K|Q]
        wqk_u = jnp.concatenate([bp['wqu'], bp['wku']], axis=-1)      # (dim, hk2) [Q|K]
        return dict(
            xn=bp['wnx'] @ wkq_x, xg=bp['wgx'] @ wkq_x,
            um=bp['wnu'] @ wqk_u, ux=bp['wgu'] @ wqk_u,
            wc=norm * (hmask2 @ bp['w1'][:N_HEADS]),
            w1s=jnp.zeros((SEL_PAD, FF_DIM), f32).at[:N_SEL].set(bp['w1'][N_HEADS:]),
            b1=bp['b1'][0], b2=bp['b2'][0], w2=bp['w2'],
            w3=bp['w3'][:, 0], b3=bp['b3'][0, 0])

    rm, ins = fold(params['removal']), fold(params['insertion'])

    # node projections (both branches, lane-stacked) + identity block carrying sel
    wx = jnp.zeros((dim + SEL_PAD, w_lanes), f32)
    wx = wx.at[:dim, :hk2].set(rm['xn']).at[:dim, hk2:2 * hk2].set(ins['xn'])
    wx = wx.at[dim:, 2 * hk2:].set(jnp.eye(SEL_PAD, dtype=f32))

    # pooled-stat folds: [0] = multiplicative user term, [1] = additive graph term
    wug = jnp.zeros((2, 4 * dim, w_lanes), f32)
    wug = wug.at[0, :dim, :hk2].set(rm['um']).at[0, :dim, hk2:2 * hk2].set(ins['um'])
    wug = wug.at[0, dim:2 * dim, :hk2].set(rm['ux'])
    wug = wug.at[0, dim:2 * dim, hk2:2 * hk2].set(ins['ux'])
    wug = wug.at[1, 2 * dim:3 * dim, :hk2].set(rm['xg'])
    wug = wug.at[1, 3 * dim:, hk2:2 * hk2].set(ins['xg'])

    # first MLP layer (compat-fold + sel), block structured over the branches
    w1 = jnp.zeros((w_lanes, ff2), f32)
    w1 = w1.at[:hk2, :FF_DIM].set(rm['wc']).at[hk2:2 * hk2, FF_DIM:].set(ins['wc'])
    w1 = w1.at[2 * hk2:, :FF_DIM].set(rm['w1s']).at[2 * hk2:, FF_DIM:].set(ins['w1s'])

    # second MLP layer, block diagonal
    w2 = jnp.zeros((ff2, ff2), f32)
    w2 = w2.at[:FF_DIM, :FF_DIM].set(rm['w2']).at[FF_DIM:, FF_DIM:].set(ins['w2'])

    bias = jnp.zeros((8, ff2), f32)
    bias = bias.at[0, :FF_DIM].set(rm['b1']).at[0, FF_DIM:].set(ins['b1'])
    bias = bias.at[1, :FF_DIM].set(rm['b2']).at[1, FF_DIM:].set(ins['b2'])

    return dict(wx=wx.astype(dtype), wug=wug.astype(dtype),
                w1=w1.astype(dtype), w2=w2.astype(dtype), bias=bias,
                w3b=jnp.stack([rm['w3'], ins['w3']]),        # (2, FF) f32
                b3b=jnp.stack([rm['b3'], ins['b3']]))        # (2,)    f32


# ----------------------------------------------------------------------------
# Forward pass (training semantics: log-likelihoods are computed).
# ----------------------------------------------------------------------------
def _prepare_candidates(facilities_em, solution, selection_sig):
    bs, fs, _ = facilities_em.shape
    _, p_size = solution.shape
    cand_size = fs - p_size

    mask = jnp.zeros((bs, fs), jnp.int32)
    mask = mask.at[jnp.arange(bs)[:, None], solution].set(1)
    cand_list = jnp.argsort(mask, axis=1, stable=True)[:, :cand_size]
    cand_list = cand_list.astype(solution.dtype)

    p_em = jnp.take_along_axis(facilities_em, solution[..., None], axis=1)
    q_em = jnp.take_along_axis(facilities_em, cand_list[..., None], axis=1)

    ss = jnp.transpose(selection_sig, (0, 2, 1))                  # (bs, fs, 4)
    sel1 = jnp.take_along_axis(ss, solution[..., None], axis=1)   # (bs, p, 4)
    sel2 = jnp.take_along_axis(ss, cand_list[..., None], axis=1)  # (bs, cand, 4)
    return p_em, q_em, sel1, sel2, cand_list


def decoder_scores(wpack, users_em, p_em, q_em, sel1, sel2, v_range):
    """Action logits for both branches from one fused Pallas call."""
    f32 = jnp.float32
    bs, p_size, dim = p_em.shape
    cand = q_em.shape[1]
    fs = p_size + cand
    fs_c = _round_up(fs, 8)
    ff2 = 2 * FF_DIM
    dtype = wpack['wx'].dtype

    # pooled statistics: [mean_u | max_u | max_p | max_q]  -> one lane-dense row
    pool = jnp.concatenate(
        [jnp.mean(users_em, axis=1), jnp.max(users_em, axis=1),
         jnp.max(p_em, axis=1), jnp.max(q_em, axis=1)], axis=-1)  # (bs, 4*dim)

    # node embeddings with the selection signature carried along the lane axis
    x_all = jnp.concatenate([p_em, q_em], axis=1)                 # (bs, fs, dim)
    sel = jnp.concatenate([sel1, sel2], axis=1)                   # (bs, fs, 4)
    sel = jnp.pad(sel, ((0, 0), (0, 0), (0, SEL_PAD - N_SEL)))
    x_aug = jnp.concatenate([x_all, sel], axis=-1)                # (bs, fs, dim+8)
    if fs_c != fs:
        x_aug = jnp.pad(x_aug, ((0, 0), (0, fs_c - fs), (0, 0)))

    # per-row final weights (branch gate + per-row b3); static structure
    w3g = jnp.zeros((fs_c, ff2), f32)
    w3g = w3g.at[:p_size, :FF_DIM].set(wpack['w3b'][0])
    w3g = w3g.at[p_size:fs, FF_DIM:].set(wpack['w3b'][1])
    b3v = jnp.zeros((1, fs_c), f32)
    b3v = b3v.at[0, :p_size].set(wpack['b3b'][0]).at[0, p_size:fs].set(wpack['b3b'][1])

    scores = _score_pallas(pool.astype(dtype), x_aug.astype(dtype),
                           wpack, w3g, b3v, float(v_range))
    return scores[:, :p_size], scores[:, p_size:fs]


def multi_head_decoder_forward(wpack, users_em, facilities_em, solution,
                               selection_sig, sample_key, v_range=6.0):
    p_em, q_em, sel1, sel2, cand_list = _prepare_candidates(
        facilities_em, solution, selection_sig)

    act_rm, act_in = decoder_scores(wpack, users_em, p_em, q_em, sel1, sel2, v_range)

    logp_rm = jax.nn.log_softmax(act_rm, axis=-1)
    logp_in = jax.nn.log_softmax(act_in, axis=-1)

    # TODO(synk): torch.multinomial RNG stream not reproducible; jax.random.categorical
    # samples from the same distribution deterministically under the given key.
    k1, k2 = jax.random.split(sample_key)
    idx_rm = jax.random.categorical(k1, act_rm, axis=-1)[:, None]
    idx_in = jax.random.categorical(k2, act_in, axis=-1)[:, None]

    a_rm = jnp.take_along_axis(solution, idx_rm, axis=1)
    a_in = jnp.take_along_axis(cand_list, idx_in, axis=1)
    action = jnp.concatenate([a_rm, a_in], axis=-1)               # (bs, 2)

    log_ll = (jnp.take_along_axis(logp_rm, idx_rm, axis=1)
              + jnp.take_along_axis(logp_in, idx_in, axis=1))     # (bs, 1)

    entropy = None   # require_entropy=False path
    return action, log_ll, entropy


# ----------------------------------------------------------------------------
# Pure-JAX unfolded reference (mirrors the PyTorch math) for correctness check.
# ----------------------------------------------------------------------------
def _scores_ref(params, users_em, p_em, q_em, sel1, sel2, v_range):
    dim = users_em.shape[-1]
    kd = dim // N_HEADS
    norm = 1.0 / math.sqrt(kd)

    def heads(z, w):   # w packed as (dim, H*kd)
        b, n, _ = z.shape
        return (z @ w).reshape(b, n, N_HEADS, kd)

    def branch(bp, x_em, sel):
        u = users_em @ bp['wnu'] + (jnp.max(users_em, 1) @ bp['wgu'])[:, None, :]
        x = x_em @ bp['wnx'] + (jnp.max(x_em, 1) @ bp['wgx'])[:, None, :]
        uQm = heads(u, bp['wqu']).mean(1)
        uKm = heads(u, bp['wku']).mean(1)
        xQ = heads(x, bp['wqx'])
        xK = heads(x, bp['wkx'])
        c1 = jnp.einsum('bnhk,bhk->bnh', xK, uQm)
        c2 = jnp.einsum('bnhk,bhk->bnh', xQ, uKm)
        compat = norm * (c1 + c2)
        inp = jnp.concatenate([compat, sel], axis=-1)
        h1 = jax.nn.relu(inp @ bp['w1'] + bp['b1'])
        h2 = jax.nn.relu(h1 @ bp['w2'] + bp['b2'])
        logit = h2 @ bp['w3'] + bp['b3']
        return jnp.tanh(logit[..., 0]) * v_range

    return (branch(params['removal'], p_em, sel1),
            branch(params['insertion'], q_em, sel2))


if __name__ == "__main__":
    key = jax.random.PRNGKey(0)
    k_par, k_u, k_f, k_sol, k_sig, k_sample = jax.random.split(key, 6)

    bs, us, fs, p_size, dim = 2, 8, 16, 4, 32
    params = init_params(k_par, dim)

    users_em = jax.random.normal(k_u, (bs, us, dim), jnp.float32)
    facilities_em = jax.random.normal(k_f, (bs, fs, dim), jnp.float32)
    solution = jnp.stack([
        jax.random.permutation(jax.random.fold_in(k_sol, b), fs)[:p_size]
        for b in range(bs)]).astype(jnp.int32)                    # (bs, p_size)
    selection_sig = jax.random.normal(k_sig, (bs, 4, fs), jnp.float32)

    p_em, q_em, sel1, sel2, _ = _prepare_candidates(facilities_em, solution, selection_sig)
    ref_rm, ref_in = _scores_ref(params, users_em, p_em, q_em, sel1, sel2, 6.0)

    # 1) folding/fusion exactness check: f32-packed weights vs unfolded reference
    wpack_f32 = pack_decoder_weights(params, dim, dtype=jnp.float32)
    a_rm, a_in = decoder_scores(wpack_f32, users_em, p_em, q_em, sel1, sel2, 6.0)
    assert jnp.allclose(a_rm, ref_rm, atol=1e-3, rtol=1e-3), "removal scores mismatch (f32)"
    assert jnp.allclose(a_in, ref_in, atol=1e-3, rtol=1e-3), "insertion scores mismatch (f32)"

    # 2) performance path: bf16 MXU operands (f32 accumulation / elementwise);
    #    loose tolerance — exactness of the folding is established by (1).
    wpack = pack_decoder_weights(params, dim, dtype=jnp.bfloat16)
    b_rm, b_in = decoder_scores(wpack, users_em, p_em, q_em, sel1, sel2, 6.0)
    assert jnp.allclose(b_rm, ref_rm, atol=2e-1, rtol=5e-2), "removal scores mismatch (bf16)"
    assert jnp.allclose(b_in, ref_in, atol=2e-1, rtol=5e-2), "insertion scores mismatch (bf16)"

    action, log_ll, entropy = multi_head_decoder_forward(
        wpack, users_em, facilities_em, solution, selection_sig,
        k_sample, v_range=6.0)
    jax.block_until_ready((action, log_ll))
    print("KERNEL_OK")
</pallas_src>

<mosaic_0001>
module attributes {stable_mosaic.version = 11 : i64} {
  func.func @_score_kernel(%arg0: i32, %arg1: memref<8x128xf32, #tpu.memory_space<vmem>>, %arg2: memref<8x16x40xf32, #tpu.memory_space<vmem>>, %arg3: memref<40x136xf32, #tpu.memory_space<vmem>>, %arg4: memref<2x128x136xf32, #tpu.memory_space<vmem>>, %arg5: memref<136x64xf32, #tpu.memory_space<vmem>>, %arg6: memref<64x64xf32, #tpu.memory_space<vmem>>, %arg7: memref<16x64xf32, #tpu.memory_space<vmem>>, %arg8: memref<1x16xf32, #tpu.memory_space<vmem>>, %arg9: memref<8x64xf32, #tpu.memory_space<vmem>>, %arg10: memref<8x128xf32, #tpu.memory_space<vmem>>) attributes {dimension_semantics = [#tpu.dimension_semantics<parallel>], iteration_bounds = array<i64: 1>, scalar_prefetch = 0 : i64, scratch_operands = 0 : i64, tpu.core_type = #tpu.core_type<tc>, window_params = [{transform_indices = @transform_0, window_bounds = array<i64: 8, 128>}, {transform_indices = @transform_1, window_bounds = array<i64: 8, 16, 40>}, {pipeline_mode = #tpu.pipeline_mode<synchronous>, transform_indices = @transform_2, window_bounds = array<i64: 40, 136>}, {pipeline_mode = #tpu.pipeline_mode<synchronous>, transform_indices = @transform_3, window_bounds = array<i64: 2, 128, 136>}, {pipeline_mode = #tpu.pipeline_mode<synchronous>, transform_indices = @transform_4, window_bounds = array<i64: 136, 64>}, {pipeline_mode = #tpu.pipeline_mode<synchronous>, transform_indices = @transform_5, window_bounds = array<i64: 64, 64>}, {pipeline_mode = #tpu.pipeline_mode<synchronous>, transform_indices = @transform_6, window_bounds = array<i64: 16, 64>}, {pipeline_mode = #tpu.pipeline_mode<synchronous>, transform_indices = @transform_7, window_bounds = array<i64: 1, 16>}, {pipeline_mode = #tpu.pipeline_mode<synchronous>, transform_indices = @transform_8, window_bounds = array<i64: 8, 64>}, {transform_indices = @transform_9, window_bounds = array<i64: 8, 128>}]} {
    %c0 = arith.constant 0 : index
    %c0_0 = arith.constant 0 : index
    %0 = vector.load %arg1[%c0, %c0_0] : memref<8x128xf32, #tpu.memory_space<vmem>>, vector<8x128xf32>
    %c0_1 = arith.constant 0 : index
    %c0_2 = arith.constant 0 : index
    %c0_3 = arith.constant 0 : index
    %1 = vector.load %arg4[%c0_1, %c0_2, %c0_3] : memref<2x128x136xf32, #tpu.memory_space<vmem>>, vector<1x128x136xf32>
    %2 = vector.shape_cast %1 : vector<1x128x136xf32> to vector<128x136xf32>
    %cst = arith.constant dense<0.000000e+00> : vector<8x136xf32>
    %3 = tpu.matmul %0, %2, %cst {dimension_numbers = #tpu.dot_dimension_numbers<[1], [0], [0], [1], [0, 0, 1, 1], [], []>} : vector<8x128xf32>, vector<128x136xf32>, vector<8x136xf32> -> vector<8x136xf32>
    %c1 = arith.constant 1 : index
    %c0_4 = arith.constant 0 : index
    %c0_5 = arith.constant 0 : index
    %4 = vector.load %arg4[%c1, %c0_4, %c0_5] : memref<2x128x136xf32, #tpu.memory_space<vmem>>, vector<1x128x136xf32>
    %5 = vector.shape_cast %4 : vector<1x128x136xf32> to vector<128x136xf32>
    %cst_6 = arith.constant dense<0.000000e+00> : vector<8x136xf32>
    %6 = tpu.matmul %0, %5, %cst_6 {dimension_numbers = #tpu.dot_dimension_numbers<[1], [0], [0], [1], [0, 0, 1, 1], [], []>} : vector<8x128xf32>, vector<128x136xf32>, vector<8x136xf32> -> vector<8x136xf32>
    %7 = tpu.iota {dimensions = array<i32: 1>} : vector<1x136xi32>
    %c128_i32 = arith.constant 128 : i32
    %8 = vector.broadcast %c128_i32 : i32 to vector<1x136xi32>
    %9 = arith.cmpi sge, %7, %8 : vector<1x136xi32>
    %cst_7 = arith.constant 1.000000e+00 : f32
    %10 = vector.shape_cast %9 : vector<1x136xi1> to vector<1x136xi1>
    %11 = vector.broadcast %10 : vector<1x136xi1> to vector<8x136xi1>
    %12 = vector.broadcast %cst_7 : f32 to vector<8x136xf32>
    %13 = arith.select %11, %12, %3 : vector<8x136xi1>, vector<8x136xf32>
    %c0_8 = arith.constant 0 : index
    %c0_9 = arith.constant 0 : index
    %c0_10 = arith.constant 0 : index
    %14 = vector.load %arg2[%c0_8, %c0_9, %c0_10] : memref<8x16x40xf32, #tpu.memory_space<vmem>>, vector<8x16x40xf32>
    %15 = vector.shape_cast %14 : vector<8x16x40xf32> to vector<128x40xf32>
    %c0_11 = arith.constant 0 : index
    %c0_12 = arith.constant 0 : index
    %16 = vector.load %arg3[%c0_11, %c0_12] : memref<40x136xf32, #tpu.memory_space<vmem>>, vector<40x136xf32>
    %cst_13 = arith.constant dense<0.000000e+00> : vector<128x136xf32>
    %17 = tpu.matmul %15, %16, %cst_13 {dimension_numbers = #tpu.dot_dimension_numbers<[1], [0], [0], [1], [0, 0, 1, 1], [], []>} : vector<128x40xf32>, vector<40x136xf32>, vector<128x136xf32> -> vector<128x136xf32>
    %18 = vector.shape_cast %17 : vector<128x136xf32> to vector<8x16x136xf32>
    %19 = vector.shape_cast %6 : vector<8x136xf32> to vector<8x1x136xf32>
    %20 = vector.broadcast %19 : vector<8x1x136xf32> to vector<8x16x136xf32>
    %21 = arith.addf %18, %20 : vector<8x16x136xf32>
    %22 = vector.shape_cast %13 : vector<8x136xf32> to vector<8x1x136xf32>
    %23 = vector.broadcast %22 : vector<8x1x136xf32> to vector<8x16x136xf32>
    %24 = arith.mulf %21, %23 : vector<8x16x136xf32>
    %25 = vector.shape_cast %24 : vector<8x16x136xf32> to vector<128x136xf32>
    %c0_14 = arith.constant 0 : index
    %c0_15 = arith.constant 0 : index
    %26 = vector.load %arg9[%c0_14, %c0_15] : memref<8x64xf32, #tpu.memory_space<vmem>>, vector<8x64xf32>
    %c0_16 = arith.constant 0 : index
    %c0_17 = arith.constant 0 : index
    %27 = vector.load %arg5[%c0_16, %c0_17] : memref<136x64xf32, #tpu.memory_space<vmem>>, vector<136x64xf32>
    %cst_18 = arith.constant dense<0.000000e+00> : vector<128x64xf32>
    %28 = tpu.matmul %25, %27, %cst_18 {dimension_numbers = #tpu.dot_dimension_numbers<[1], [0], [0], [1], [0, 0, 1, 1], [], []>} : vector<128x136xf32>, vector<136x64xf32>, vector<128x64xf32> -> vector<128x64xf32>
    %29 = vector.extract_strided_slice %26 {offsets = [0, 0], sizes = [1, 64], strides = [1, 1]} : vector<8x64xf32> to vector<1x64xf32>
    %30 = vector.broadcast %29 : vector<1x64xf32> to vector<128x64xf32>
    %31 = arith.addf %28, %30 : vector<128x64xf32>
    %cst_19 = arith.constant 0.000000e+00 : f32
    %32 = vector.broadcast %cst_19 : f32 to vector<128x64xf32>
    %33 = arith.maximumf %31, %32 : vector<128x64xf32>
    %c0_20 = arith.constant 0 : index
    %c0_21 = arith.constant 0 : index
    %34 = vector.load %arg6[%c0_20, %c0_21] : memref<64x64xf32, #tpu.memory_space<vmem>>, vector<64x64xf32>
    %cst_22 = arith.constant dense<0.000000e+00> : vector<128x64xf32>
    %35 = tpu.matmul %33, %34, %cst_22 {dimension_numbers = #tpu.dot_dimension_numbers<[1], [0], [0], [1], [0, 0, 1, 1], [], []>} : vector<128x64xf32>, vector<64x64xf32>, vector<128x64xf32> -> vector<128x64xf32>
    %36 = vector.extract_strided_slice %26 {offsets = [1, 0], sizes = [1, 64], strides = [1, 1]} : vector<8x64xf32> to vector<1x64xf32>
    %37 = vector.broadcast %36 : vector<1x64xf32> to vector<128x64xf32>
    %38 = arith.addf %35, %37 : vector<128x64xf32>
    %cst_23 = arith.constant 0.000000e+00 : f32
    %39 = vector.broadcast %cst_23 : f32 to vector<128x64xf32>
    %40 = arith.maximumf %38, %39 : vector<128x64xf32>
    %41 = vector.shape_cast %40 : vector<128x64xf32> to vector<8x16x64xf32>
    %c0_24 = arith.constant 0 : index
    %c0_25 = arith.constant 0 : index
    %42 = vector.load %arg7[%c0_24, %c0_25] : memref<16x64xf32, #tpu.memory_space<vmem>>, vector<16x64xf32>
    %43 = vector.shape_cast %42 : vector<16x64xf32> to vector<1x16x64xf32>
    %44 = vector.broadcast %43 : vector<1x16x64xf32> to vector<8x16x64xf32>
    %45 = arith.mulf %41, %44 : vector<8x16x64xf32>
    %cst_26 = arith.constant dense<0.000000e+00> : vector<8x16xf32>
    %46 = vector.multi_reduction <add>, %45, %cst_26 [2] : vector<8x16x64xf32> to vector<8x16xf32>
    %c0_27 = arith.constant 0 : index
    %c0_28 = arith.constant 0 : index
    %47 = vector.load %arg8[%c0_27, %c0_28] : memref<1x16xf32, #tpu.memory_space<vmem>>, vector<1x16xf32>
    %48 = vector.broadcast %47 : vector<1x16xf32> to vector<8x16xf32>
    %49 = arith.addf %46, %48 : vector<8x16xf32>
    %50 = math.tanh %49 : vector<8x16xf32>
    %cst_29 = arith.constant 6.000000e+00 : f32
    %51 = vector.broadcast %cst_29 : f32 to vector<8x16xf32>
    %52 = arith.mulf %50, %51 : vector<8x16xf32>
    %cst_30 = arith.constant 0.000000e+00 : f32
    %53 = vector.broadcast %cst_30 : f32 to vector<8x112xf32>
    %54 = tpu.concatenate %52, %53 in 1 : vector<8x16xf32>, vector<8x112xf32> -> vector<8x128xf32>
    %c0_31 = arith.constant 0 : index
    %c0_32 = arith.constant 0 : index
    %55 = vector.load %arg10[%c0_31, %c0_32] : memref<8x128xf32, #tpu.memory_space<vmem>>, vector<8x128xf32>
    tpu.vector_store %arg10[%c0_31, %c0_32], %54 {strides = array<i32>} : memref<8x128xf32, #tpu.memory_space<vmem>>, vector<8x128xf32>,
    return
  }
  func.func @transform_0(%arg0: i32) -> (i32, i32) {
    %c0_i32 = arith.constant 0 : i32
    %c0_i32_0 = arith.constant 0 : i32
    return %arg0, %c0_i32 : i32, i32
  }
  func.func @transform_1(%arg0: i32) -> (i32, i32, i32) {
    %c0_i32 = arith.constant 0 : i32
    %c0_i32_0 = arith.constant 0 : i32
    %c0_i32_1 = arith.constant 0 : i32
    return %arg0, %c0_i32, %c0_i32_0 : i32, i32, i32
  }
  func.func @transform_2(%arg0: i32) -> (i32, i32) {
    %c0_i32 = arith.constant 0 : i32
    %c0_i32_0 = arith.constant 0 : i32
    %c0_i32_1 = arith.constant 0 : i32
    return %c0_i32, %c0_i32_0 : i32, i32
  }
  func.func @transform_3(%arg0: i32) -> (i32, i32, i32) {
    %c0_i32 = arith.constant 0 : i32
    %c0_i32_0 = arith.constant 0 : i32
    %c0_i32_1 = arith.constant 0 : i32
    %c0_i32_2 = arith.constant 0 : i32
    return %c0_i32, %c0_i32_0, %c0_i32_1 : i32, i32, i32
  }
  func.func @transform_4(%arg0: i32) -> (i32, i32) {
    %c0_i32 = arith.constant 0 : i32
    %c0_i32_0 = arith.constant 0 : i32
    %c0_i32_1 = arith.constant 0 : i32
    return %c0_i32, %c0_i32_0 : i32, i32
  }
  func.func @transform_5(%arg0: i32) -> (i32, i32) {
    %c0_i32 = arith.constant 0 : i32
    %c0_i32_0 = arith.constant 0 : i32
    %c0_i32_1 = arith.constant 0 : i32
    return %c0_i32, %c0_i32_0 : i32, i32
  }
  func.func @transform_6(%arg0: i32) -> (i32, i32) {
    %c0_i32 = arith.constant 0 : i32
    %c0_i32_0 = arith.constant 0 : i32
    %c0_i32_1 = arith.constant 0 : i32
    return %c0_i32, %c0_i32_0 : i32, i32
  }
  func.func @transform_7(%arg0: i32) -> (i32, i32) {
    %c0_i32 = arith.constant 0 : i32
    %c0_i32_0 = arith.constant 0 : i32
    %c0_i32_1 = arith.constant 0 : i32
    return %c0_i32, %c0_i32_0 : i32, i32
  }
  func.func @transform_8(%arg0: i32) -> (i32, i32) {
    %c0_i32 = arith.constant 0 : i32
    %c0_i32_0 = arith.constant 0 : i32
    %c0_i32_1 = arith.constant 0 : i32
    return %c0_i32, %c0_i32_0 : i32, i32
  }
  func.func @transform_9(%arg0: i32) -> (i32, i32) {
    %c0_i32 = arith.constant 0 : i32
    %c0_i32_0 = arith.constant 0 : i32
    return %arg0, %c0_i32 : i32, i32
  }
}

</mosaic_0001>

<llo_original>
// kernel: tpu_custom_call.1
$region0: #{tpu_custom_call.1}
  #allocation0 [shape = 'u32[]', space=smem, size = 0x4, offset = 0x4, fixed_abs, tag = 'smem constant byte address 0x4 - core index']
  #allocation1 [shape = 'u32[144,128]{1,0:T(1,128)}', space=vmem, size = 0x12000, scoped, tag = 'internal scratch']
  %s0 = inlined_call_operand.vmem [shape: f32[8,128], index: 0, kind: input, shape index: {}]
  %s1 = inlined_call_operand.vmem [shape: f32[8,16,40], index: 1, kind: input, shape index: {}]
  %s2 = inlined_call_operand.vmem [shape: f32[40,136], index: 2, kind: input, shape index: {}]
  %s3 = inlined_call_operand.vmem [shape: f32[2,128,136], index: 3, kind: input, shape index: {}]
  %s4 = inlined_call_operand.vmem [shape: f32[136,64], index: 4, kind: input, shape index: {}]
  %s5 = inlined_call_operand.vmem [shape: f32[64,64], index: 5, kind: input, shape index: {}]
  %s6 = inlined_call_operand.vmem [shape: f32[16,64], index: 6, kind: input, shape index: {}]
  %s7 = inlined_call_operand.vmem [shape: f32[1,16], index: 7, kind: input, shape index: {}]
  %s8 = inlined_call_operand.vmem [shape: f32[8,64], index: 8, kind: input, shape index: {}]
  %s9 = inlined_call_operand.hbm [shape: f32[8,128], index: 9, kind: output, shape index: {}]
  %s10 = sld [smem:[#allocation0]]
  $region46: #{tpu_custom_call.1} parent=0
    _
  %s12 = ssub.s32 1, %s10
  %s13 = scalar_select 0, %s12, %s10
  $region1: #{tpu_custom_call.1} parent=0
    #allocation2 [shape = 'u8[4096]{0}', space=vmem, size = 0x1000, scoped, tag = 'output window, operand 0, single buffered']
    #allocation3 [shape = 's32[1]{0}', space=sflag, size = 0x4, scoped, tag = 'scoped memory for tpu_custom_call.1']
    %14 = vsyncpa [#allocation3], 0
    // Predicated region
    $region2: #{tpu_custom_call.1} parent=1 // pred_check
      _
    $region3: #{tpu_custom_call.1} parent=1 // pred_check_branch
      %16 = sbr.rel (0) target = $region5
    $region4: #{tpu_custom_call.1} parent=1 // pred_region
      _
    $region5: #{tpu_custom_call.1} parent=1 // pred_fallthru
      _
    // Predicated region
    $region6: #{tpu_custom_call.1} parent=1 // pred_check
      _
    $region7: #{tpu_custom_call.1} parent=1 // pred_check_branch
      %18 = sbr.rel (0) target = $region9
    $region8: #{tpu_custom_call.1} parent=1 // pred_region
      _
    $region9: #{tpu_custom_call.1} parent=1 // pred_fallthru
      _
    // Predicated region
    $region10: #{tpu_custom_call.1} parent=1 // pred_check
      _
    $region11: #{tpu_custom_call.1} parent=1 // pred_check_branch
      %20 = sbr.rel (0) target = $region13
    $region12: #{tpu_custom_call.1} parent=1 // pred_region
      _
    $region13: #{tpu_custom_call.1} parent=1 // pred_fallthru
      _
    // Predicated region
    $region14: #{tpu_custom_call.1} parent=1 // pred_check
      _
    $region15: #{tpu_custom_call.1} parent=1 // pred_check_branch
      %22 = sbr.rel (0) target = $region17
    $region16: #{tpu_custom_call.1} parent=1 // pred_region
      _
    $region17: #{tpu_custom_call.1} parent=1 // pred_fallthru
      _
    // Predicated region
    $region18: #{tpu_custom_call.1} parent=1 // pred_check
      _
    $region19: #{tpu_custom_call.1} parent=1 // pred_check_branch
      %24 = sbr.rel (0) target = $region21
    $region20: #{tpu_custom_call.1} parent=1 // pred_region
      _
    $region21: #{tpu_custom_call.1} parent=1 // pred_fallthru
      _
    // Predicated region
    $region22: #{tpu_custom_call.1} parent=1 // pred_check
      _
    $region23: #{tpu_custom_call.1} parent=1 // pred_check_branch
      %26 = sbr.rel (0) target = $region25
    $region24: #{tpu_custom_call.1} parent=1 // pred_region
      _
    $region25: #{tpu_custom_call.1} parent=1 // pred_fallthru
      _
    // Predicated region
    $region26: #{tpu_custom_call.1} parent=1 // pred_check
      _
    $region27: #{tpu_custom_call.1} parent=1 // pred_check_branch
      %28 = sbr.rel (0) target = $region29
    $region28: #{tpu_custom_call.1} parent=1 // pred_region
      _
    $region29: #{tpu_custom_call.1} parent=1 // pred_fallthru
      _
    // Predicated region
    $region30: #{tpu_custom_call.1} parent=1 // pred_check
      _
    $region31: #{tpu_custom_call.1} parent=1 // pred_check_branch
      %30 = sbr.rel (0) target = $region33
    $region32: #{tpu_custom_call.1} parent=1 // pred_region
      _
    $region33: #{tpu_custom_call.1} parent=1 // pred_fallthru
      _
    // Predicated region
    $region34: #{tpu_custom_call.1} parent=1 // pred_check
      _
    $region35: #{tpu_custom_call.1} parent=1 // pred_check_branch
      %32 = sbr.rel (0) target = $region37
    $region36: #{tpu_custom_call.1} parent=1 // pred_region
      _
    $region37: #{tpu_custom_call.1} parent=1 // pred_fallthru
      _
    %v33 = vld [vmem:[%s0] sm:$0xff]
    %v34 = vld [vmem:[%s3] sm:$0xff]
    %v35 = vld [vmem:[%s3 + $0x8] sm:$0xff]
    %v36 = vld [vmem:[%s3 + $0x10] sm:$0xff]
    %v37 = vld [vmem:[%s3 + $0x18] sm:$0xff]
    %v38 = vld [vmem:[%s3 + $0x20] sm:$0xff]
    %v39 = vld [vmem:[%s3 + $0x28] sm:$0xff]
    %v40 = vld [vmem:[%s3 + $0x30] sm:$0xff]
    %v41 = vld [vmem:[%s3 + $0x38] sm:$0xff]
    %v42 = vld [vmem:[%s3 + $0x40] sm:$0xff]
    %v43 = vld [vmem:[%s3 + $0x48] sm:$0xff]
    %v44 = vld [vmem:[%s3 + $0x50] sm:$0xff]
    %v45 = vld [vmem:[%s3 + $0x58] sm:$0xff]
    %v46 = vld [vmem:[%s3 + $0x60] sm:$0xff]
    %v47 = vld [vmem:[%s3 + $0x68] sm:$0xff]
    %v48 = vld [vmem:[%s3 + $0x70] sm:$0xff]
    %v49 = vld [vmem:[%s3 + $0x78] sm:$0xff]
    %v50 = vld [vmem:[%s3 + $0x80] sm:$0xff]
    %v51 = vld [vmem:[%s3 + $0x88] sm:$0xff]
    %v52 = vld [vmem:[%s3 + $0x90] sm:$0xff]
    %v53 = vld [vmem:[%s3 + $0x98] sm:$0xff]
    %v54 = vld [vmem:[%s3 + $0xa0] sm:$0xff]
    %v55 = vld [vmem:[%s3 + $0xa8] sm:$0xff]
    %v56 = vld [vmem:[%s3 + $0xb0] sm:$0xff]
    %v57 = vld [vmem:[%s3 + $0xb8] sm:$0xff]
    %v58 = vld [vmem:[%s3 + $0xc0] sm:$0xff]
    %v59 = vld [vmem:[%s3 + $0xc8] sm:$0xff]
    %v60 = vld [vmem:[%s3 + $0xd0] sm:$0xff]
    %v61 = vld [vmem:[%s3 + $0xd8] sm:$0xff]
    %v62 = vld [vmem:[%s3 + $0xe0] sm:$0xff]
    %v63 = vld [vmem:[%s3 + $0xe8] sm:$0xff]
    %v64 = vld [vmem:[%s3 + $0xf0] sm:$0xff]
    %v65 = vld [vmem:[%s3 + $0xf8] sm:$0xff]
    %66 = vmatprep.subr.mxu0 %v35
    %67 = vmatpush1.msra.mxu0 %v34
    %68 = vmatprep.subr.mxu0 %v37
    %69 = vmatpush1.msra.mxu0 %v36
    %70 = vmatprep.subr.mxu0 %v39
    %71 = vmatpush1.msra.mxu0 %v38
    %72 = vmatprep.subr.mxu0 %v41
    %73 = vmatpush1.msra.mxu0 %v40
    %74 = vmatprep.subr.mxu0 %v43
    %75 = vmatpush1.msra.mxu0 %v42
    %76 = vmatprep.subr.mxu0 %v45
    %77 = vmatpush1.msra.mxu0 %v44
    %78 = vmatprep.subr.mxu0 %v47
    %79 = vmatpush1.msra.mxu0 %v46
    %80 = vmatprep.subr.mxu0 %v49
    %81 = vmatpush1.msra.mxu0 %v48
    %82 = vmatprep.subr.mxu0 %v51
    %83 = vmatpush1.msra.mxu0 %v50
    %84 = vmatprep.subr.mxu0 %v53
    %85 = vmatpush1.msra.mxu0 %v52
    %86 = vmatprep.subr.mxu0 %v55
    %87 = vmatpush1.msra.mxu0 %v54
    %88 = vmatprep.subr.mxu0 %v57
    %89 = vmatpush1.msra.mxu0 %v56
    %90 = vmatprep.subr.mxu0 %v59
    %91 = vmatpush1.msra.mxu0 %v58
    %92 = vmatprep.subr.mxu0 %v61
    %93 = vmatpush1.msra.mxu0 %v60
    %94 = vmatprep.subr.mxu0 %v63
    %95 = vmatpush1.msra.mxu0 %v62
    %96 = vmatprep.subr.mxu0 %v65
    %97 = vmatpush1.msra.mxu0 %v64
    %98 = vmatprep.subr.mxu0 0.0
    %99 = vmatpush1.msra.mxu0 0.0
    %100 = vmatprep.subr.mxu0 0.0
    %101 = vmatpush1.msra.mxu0 0.0
    %102 = vmatprep.subr.mxu0 0.0
    %103 = vmatpush1.msra.mxu0 0.0
    %104 = vmatprep.subr.mxu0 0.0
    %105 = vmatpush1.msra.mxu0 0.0
    %106 = vmatprep.subr.mxu0 0.0
    %107 = vmatpush1.msra.mxu0 0.0
    %108 = vmatprep.subr.mxu0 0.0
    %109 = vmatpush1.msra.mxu0 0.0
    %110 = vmatprep.subr.mxu0 0.0
    %111 = vmatpush1.msra.mxu0 0.0
    %112 = vmatprep.subr.mxu0 0.0
    %113 = vmatpush1.msra.mxu0 0.0
    %114 = vmatprep.subr.mxu0 0.0
    %115 = vmatpush1.msra.mxu0 0.0
    %116 = vmatprep.subr.mxu0 0.0
    %117 = vmatpush1.msra.mxu0 0.0
    %118 = vmatprep.subr.mxu0 0.0
    %119 = vmatpush1.msra.mxu0 0.0
    %120 = vmatprep.subr.mxu0 0.0
    %121 = vmatpush1.msra.mxu0 0.0
    %122 = vmatprep.subr.mxu0 0.0
    %123 = vmatpush1.msra.mxu0 0.0
    %124 = vmatprep.subr.mxu0 0.0
    %125 = vmatpush1.msra.mxu0 0.0
    %126 = vmatprep.subr.mxu0 0.0
    %127 = vmatpush1.msra.mxu0 0.0
    %128 = vmatprep.subr.mxu0 0.0
    %129 = vmatpush1.msra.mxu0 0.0
    %130 = vmatprep.mubr.f32.mxu0 0.0
    %131 = vmatmul.mubr.f32.gmra.mrb[0].mxu0 %v33
    %v132 = vpop.f32.mrb[0].mxu0
    %v133 = vadd.f32 0.0, %v132
    %v134 = vpop.f32.mrb[0].mxu0
    %v135 = vadd.f32 0.0, %v134
    %136 = vdwg.mxu0
    %s137 = scalar_lea.vmem %s3, 256
    %v138 = vld [vmem:[%s137] sm:$0xff]
    %v139 = vld [vmem:[%s137 + $0x8] sm:$0xff]
    %v140 = vld [vmem:[%s137 + $0x10] sm:$0xff]
    %v141 = vld [vmem:[%s137 + $0x18] sm:$0xff]
    %v142 = vld [vmem:[%s137 + $0x20] sm:$0xff]
    %v143 = vld [vmem:[%s137 + $0x28] sm:$0xff]
    %v144 = vld [vmem:[%s137 + $0x30] sm:$0xff]
    %v145 = vld [vmem:[%s137 + $0x38] sm:$0xff]
    %v146 = vld [vmem:[%s137 + $0x40] sm:$0xff]
    %v147 = vld [vmem:[%s137 + $0x48] sm:$0xff]
    %v148 = vld [vmem:[%s137 + $0x50] sm:$0xff]
    %v149 = vld [vmem:[%s137 + $0x58] sm:$0xff]
    %v150 = vld [vmem:[%s137 + $0x60] sm:$0xff]
    %v151 = vld [vmem:[%s137 + $0x68] sm:$0xff]
    %v152 = vld [vmem:[%s137 + $0x70] sm:$0xff]
    %v153 = vld [vmem:[%s137 + $0x78] sm:$0xff]
    %v154 = vld [vmem:[%s137 + $0x80] sm:$0xff]
    %v155 = vld [vmem:[%s137 + $0x88] sm:$0xff]
    %v156 = vld [vmem:[%s137 + $0x90] sm:$0xff]
    %v157 = vld [vmem:[%s137 + $0x98] sm:$0xff]
    %v158 = vld [vmem:[%s137 + $0xa0] sm:$0xff]
    %v159 = vld [vmem:[%s137 + $0xa8] sm:$0xff]
    %v160 = vld [vmem:[%s137 + $0xb0] sm:$0xff]
    %v161 = vld [vmem:[%s137 + $0xb8] sm:$0xff]
    %v162 = vld [vmem:[%s137 + $0xc0] sm:$0xff]
    %v163 = vld [vmem:[%s137 + $0xc8] sm:$0xff]
    %v164 = vld [vmem:[%s137 + $0xd0] sm:$0xff]
    %v165 = vld [vmem:[%s137 + $0xd8] sm:$0xff]
    %v166 = vld [vmem:[%s137 + $0xe0] sm:$0xff]
    %v167 = vld [vmem:[%s137 + $0xe8] sm:$0xff]
    %v168 = vld [vmem:[%s137 + $0xf0] sm:$0xff]
    %v169 = vld [vmem:[%s137 + $0xf8] sm:$0xff]
    %170 = vmatprep.subr.mxu0 %v139
    %171 = vmatpush1.msra.mxu0 %v138
    %172 = vmatprep.subr.mxu0 %v141
    %173 = vmatpush1.msra.mxu0 %v140
    %174 = vmatprep.subr.mxu0 %v143
    %175 = vmatpush1.msra.mxu0 %v142
    %176 = vmatprep.subr.mxu0 %v145
    %177 = vmatpush1.msra.mxu0 %v144
    %178 = vmatprep.subr.mxu0 %v147
    %179 = vmatpush1.msra.mxu0 %v146
    %180 = vmatprep.subr.mxu0 %v149
    %181 = vmatpush1.msra.mxu0 %v148
    %182 = vmatprep.subr.mxu0 %v151
    %183 = vmatpush1.msra.mxu0 %v150
    %184 = vmatprep.subr.mxu0 %v153
    %185 = vmatpush1.msra.mxu0 %v152
    %186 = vmatprep.subr.mxu0 %v155
    %187 = vmatpush1.msra.mxu0 %v154
    %188 = vmatprep.subr.mxu0 %v157
    %189 = vmatpush1.msra.mxu0 %v156
    %190 = vmatprep.subr.mxu0 %v159
    %191 = vmatpush1.msra.mxu0 %v158
    %192 = vmatprep.subr.mxu0 %v161
    %193 = vmatpush1.msra.mxu0 %v160
    %194 = vmatprep.subr.mxu0 %v163
    %195 = vmatpush1.msra.mxu0 %v162
    %196 = vmatprep.subr.mxu0 %v165
    %197 = vmatpush1.msra.mxu0 %v164
    %198 = vmatprep.subr.mxu0 %v167
    %199 = vmatpush1.msra.mxu0 %v166
    %200 = vmatprep.subr.mxu0 %v169
    %201 = vmatpush1.msra.mxu0 %v168
    %202 = vmatprep.subr.mxu0 0.0
    %203 = vmatpush1.msra.mxu0 0.0
    %204 = vmatprep.subr.mxu0 0.0
    %205 = vmatpush1.msra.mxu0 0.0
    %206 = vmatprep.subr.mxu0 0.0
    %207 = vmatpush1.msra.mxu0 0.0
    %208 = vmatprep.subr.mxu0 0.0
    %209 = vmatpush1.msra.mxu0 0.0
    %210 = vmatprep.subr.mxu0 0.0
    %211 = vmatpush1.msra.mxu0 0.0
    %212 = vmatprep.subr.mxu0 0.0
    %213 = vmatpush1.msra.mxu0 0.0
    %214 = vmatprep.subr.mxu0 0.0
    %215 = vmatpush1.msra.mxu0 0.0
    %216 = vmatprep.subr.mxu0 0.0
    %217 = vmatpush1.msra.mxu0 0.0
    %218 = vmatprep.subr.mxu0 0.0
    %219 = vmatpush1.msra.mxu0 0.0
    %220 = vmatprep.subr.mxu0 0.0
    %221 = vmatpush1.msra.mxu0 0.0
    %222 = vmatprep.subr.mxu0 0.0
    %223 = vmatpush1.msra.mxu0 0.0
    %224 = vmatprep.subr.mxu0 0.0
    %225 = vmatpush1.msra.mxu0 0.0
    %226 = vmatprep.subr.mxu0 0.0
    %227 = vmatpush1.msra.mxu0 0.0
    %228 = vmatprep.subr.mxu0 0.0
    %229 = vmatpush1.msra.mxu0 0.0
    %230 = vmatprep.subr.mxu0 0.0
    %231 = vmatpush1.msra.mxu0 0.0
    %232 = vmatprep.subr.mxu0 0.0
    %233 = vmatpush1.msra.mxu0 0.0
    %234 = vmatprep.mubr.f32.mxu0 0.0
    %235 = vmatmul.mubr.f32.gmra.mrb[0].mxu0 %v33
    %v236 = vpop.f32.mrb[0].mxu0
    %v237 = vadd.f32 0.0, %v236
    %v238 = vpop.f32.mrb[0].mxu0
    %v239 = vadd.f32 0.0, %v238
    %240 = vdwg.mxu0
    %v241 = vlaneseq
    %v242 = vand.u32 %v241, 127
    %v243 = vadd.s32 %v242, 128
    %vm244 = vcmp.ge.s32.totalorder %v242, 128
    %vm245 = vcmp.ge.s32.totalorder %v243, 128
    %v246 = vsel %vm244, 1, 0
    %v247 = vsel %vm245, 1, 0
    %vm248 = vcmp.eq.s32.totalorder %v246, 1
    %vm249 = vcmp.eq.s32.totalorder %v247, 1
    %v250 = vsel %vm248, 1.0, %v133
    %v251 = vsel %vm249, 1.0, %v135
    %v252 = vld [vmem:[%s1] sm:$0xff]
    %v253 = vld [vmem:[%s1 + $0x8] sm:$0xff]
    %v254 = vld [vmem:[%s1 + $0x10] sm:$0xff]
    %v255 = vld [vmem:[%s1 + $0x18] sm:$0xff]
    %v256 = vld [vmem:[%s1 + $0x20] sm:$0xff]
    %v257 = vld [vmem:[%s1 + $0x28] sm:$0xff]
    %v258 = vld [vmem:[%s1 + $0x30] sm:$0xff]
    %v259 = vld [vmem:[%s1 + $0x38] sm:$0xff]
    %v260 = vld [vmem:[%s1 + $0x40] sm:$0xff]
    %v261 = vld [vmem:[%s1 + $0x48] sm:$0xff]
    %v262 = vld [vmem:[%s1 + $0x50] sm:$0xff]
    %v263 = vld [vmem:[%s1 + $0x58] sm:$0xff]
    %v264 = vld [vmem:[%s1 + $0x60] sm:$0xff]
    %v265 = vld [vmem:[%s1 + $0x68] sm:$0xff]
    %v266 = vld [vmem:[%s1 + $0x70] sm:$0xff]
    %v267 = vld [vmem:[%s1 + $0x78] sm:$0xff]
    %v268 = vld [vmem:[%s2] sm:$0xff]
    %v269 = vld [vmem:[%s2 + $0x8] sm:$0xff]
    %v270 = vld [vmem:[%s2 + $0x10] sm:$0xff]
    %v271 = vld [vmem:[%s2 + $0x18] sm:$0xff]
    %v272 = vld [vmem:[%s2 + $0x20] sm:$0xff]
    %v273 = vld [vmem:[%s2 + $0x28] sm:$0xff]
    %v274 = vld [vmem:[%s2 + $0x30] sm:$0xff]
    %v275 = vld [vmem:[%s2 + $0x38] sm:$0xff]
    %v276 = vld [vmem:[%s2 + $0x40] sm:$0xff]
    %v277 = vld [vmem:[%s2 + $0x48] sm:$0xff]
    %vm278 = vcmask 326656
    %v280 = vsel %vm278, %v252, 0
    %v283 = vsel %vm278, %v253, 0
    %v286 = vsel %vm278, %v254, 0
    %v289 = vsel %vm278, %v255, 0
    %v292 = vsel %vm278, %v256, 0
    %v295 = vsel %vm278, %v257, 0
    %v298 = vsel %vm278, %v258, 0
    %v301 = vsel %vm278, %v259, 0
    %v304 = vsel %vm278, %v260, 0
    %v307 = vsel %vm278, %v261, 0
    %v310 = vsel %vm278, %v262, 0
    %v313 = vsel %vm278, %v263, 0
    %v316 = vsel %vm278, %v264, 0
    %v319 = vsel %vm278, %v265, 0
    %v322 = vsel %vm278, %v266, 0
    %v325 = vsel %vm278, %v267, 0
    %327 = vmatprep.subr.mxu0 %v269
    %328 = vmatpush1.msra.mxu0 %v268
    %329 = vmatprep.subr.mxu0 %v271
    %330 = vmatpush1.msra.mxu0 %v270
    %331 = vmatprep.subr.mxu0 %v273
    %332 = vmatpush1.msra.mxu0 %v272
    %333 = vmatprep.subr.mxu0 %v275
    %334 = vmatpush1.msra.mxu0 %v274
    %335 = vmatprep.subr.mxu0 %v277
    %336 = vmatpush1.msra.mxu0 %v276
    %337 = vmatprep.subr.mxu0 0.0
    %338 = vmatpush1.msra.mxu0 0.0
    %339 = vmatprep.subr.mxu0 0.0
    %340 = vmatpush1.msra.mxu0 0.0
    %341 = vmatprep.subr.mxu0 0.0
    %342 = vmatpush1.msra.mxu0 0.0
    %343 = vmatprep.subr.mxu0 0.0
    %344 = vmatpush1.msra.mxu0 0.0
    %345 = vmatprep.subr.mxu0 0.0
    %346 = vmatpush1.msra.mxu0 0.0
    %347 = vmatprep.subr.mxu0 0.0
    %348 = vmatpush1.msra.mxu0 0.0
    %349 = vmatprep.subr.mxu0 0.0
    %350 = vmatpush1.msra.mxu0 0.0
    %351 = vmatprep.subr.mxu0 0.0
    %352 = vmatpush1.msra.mxu0 0.0
    %353 = vmatprep.subr.mxu0 0.0
    %354 = vmatpush1.msra.mxu0 0.0
    %355 = vmatprep.subr.mxu0 0.0
    %356 = vmatpush1.msra.mxu0 0.0
    %357 = vmatprep.subr.mxu0 0.0
    %358 = vmatpush1.msra.mxu0 0.0
    %359 = vmatprep.subr.mxu0 0.0
    %360 = vmatpush1.msra.mxu0 0.0
    %361 = vmatprep.subr.mxu0 0.0
    %362 = vmatpush1.msra.mxu0 0.0
    %363 = vmatprep.subr.mxu0 0.0
    %364 = vmatpush1.msra.mxu0 0.0
    %365 = vmatprep.subr.mxu0 0.0
    %366 = vmatpush1.msra.mxu0 0.0
    %367 = vmatprep.subr.mxu0 0.0
    %368 = vmatpush1.msra.mxu0 0.0
    %369 = vmatprep.subr.mxu0 0.0
    %370 = vmatpush1.msra.mxu0 0.0
    %371 = vmatprep.subr.mxu0 0.0
    %372 = vmatpush1.msra.mxu0 0.0
    %373 = vmatprep.subr.mxu0 0.0
    %374 = vmatpush1.msra.mxu0 0.0
    %375 = vmatprep.subr.mxu0 0.0
    %376 = vmatpush1.msra.mxu0 0.0
    %377 = vmatprep.subr.mxu0 0.0
    %378 = vmatpush1.msra.mxu0 0.0
    %379 = vmatprep.subr.mxu0 0.0
    %380 = vmatpush1.msra.mxu0 0.0
    %381 = vmatprep.subr.mxu0 0.0
    %382 = vmatpush1.msra.mxu0 0.0
    %383 = vmatprep.subr.mxu0 0.0
    %384 = vmatpush1.msra.mxu0 0.0
    %385 = vmatprep.subr.mxu0 0.0
    %386 = vmatpush1.msra.mxu0 0.0
    %387 = vmatprep.subr.mxu0 0.0
    %388 = vmatpush1.msra.mxu0 0.0
    %389 = vmatprep.subr.mxu0 0.0
    %390 = vmatpush1.msra.mxu0 0.0
    %391 = vmatprep.mubr.f32.mxu0 0.0
    %392 = vmatmul.mubr.f32.gmra.mrb[0].mxu0 %v280
    %v393 = vpop.f32.mrb[0].mxu0
    %v394 = vadd.f32 0.0, %v393
    %v395 = vpop.f32.mrb[0].mxu0
    %v396 = vadd.f32 0.0, %v395
    %397 = vmatprep.mubr.f32.mxu0 0.0
    %398 = vmatmul.mubr.f32.gmra.mrb[0].mxu0 %v283
    %v399 = vpop.f32.mrb[0].mxu0
    %v400 = vadd.f32 0.0, %v399
    %v401 = vpop.f32.mrb[0].mxu0
    %v402 = vadd.f32 0.0, %v401
    %403 = vmatprep.mubr.f32.mxu0 0.0
    %404 = vmatmul.mubr.f32.gmra.mrb[0].mxu0 %v286
    %v405 = vpop.f32.mrb[0].mxu0
    %v406 = vadd.f32 0.0, %v405
    %v407 = vpop.f32.mrb[0].mxu0
    %v408 = vadd.f32 0.0, %v407
    %409 = vmatprep.mubr.f32.mxu0 0.0
    %410 = vmatmul.mubr.f32.gmra.mrb[0].mxu0 %v289
    %v411 = vpop.f32.mrb[0].mxu0
    %v412 = vadd.f32 0.0, %v411
    %v413 = vpop.f32.mrb[0].mxu0
    %v414 = vadd.f32 0.0, %v413
    %415 = vmatprep.mubr.f32.mxu0 0.0
    %416 = vmatmul.mubr.f32.gmra.mrb[0].mxu0 %v292
    %v417 = vpop.f32.mrb[0].mxu0
    %v418 = vadd.f32 0.0, %v417
    %v419 = vpop.f32.mrb[0].mxu0
    %v420 = vadd.f32 0.0, %v419
    %421 = vmatprep.mubr.f32.mxu0 0.0
    %422 = vmatmul.mubr.f32.gmra.mrb[0].mxu0 %v295
    %v423 = vpop.f32.mrb[0].mxu0
    %v424 = vadd.f32 0.0, %v423
    %v425 = vpop.f32.mrb[0].mxu0
    %v426 = vadd.f32 0.0, %v425
    %427 = vmatprep.mubr.f32.mxu0 0.0
    %428 = vmatmul.mubr.f32.gmra.mrb[0].mxu0 %v298
    %v429 = vpop.f32.mrb[0].mxu0
    %v430 = vadd.f32 0.0, %v429
    %v431 = vpop.f32.mrb[0].mxu0
    %v432 = vadd.f32 0.0, %v431
    %433 = vmatprep.mubr.f32.mxu0 0.0
    %434 = vmatmul.mubr.f32.gmra.mrb[0].mxu0 %v301
    %v435 = vpop.f32.mrb[0].mxu0
    %v436 = vadd.f32 0.0, %v435
    %v437 = vpop.f32.mrb[0].mxu0
    %v438 = vadd.f32 0.0, %v437
    %439 = vmatprep.mubr.f32.mxu0 0.0
    %440 = vmatmul.mubr.f32.gmra.mrb[0].mxu0 %v304
    %v441 = vpop.f32.mrb[0].mxu0
    %v442 = vadd.f32 0.0, %v441
    %v443 = vpop.f32.mrb[0].mxu0
    %v444 = vadd.f32 0.0, %v443
    %445 = vmatprep.mubr.f32.mxu0 0.0
    %446 = vmatmul.mubr.f32.gmra.mrb[0].mxu0 %v307
    %v447 = vpop.f32.mrb[0].mxu0
    %v448 = vadd.f32 0.0, %v447
    %v449 = vpop.f32.mrb[0].mxu0
    %v450 = vadd.f32 0.0, %v449
    %451 = vmatprep.mubr.f32.mxu0 0.0
    %452 = vmatmul.mubr.f32.gmra.mrb[0].mxu0 %v310
    %v453 = vpop.f32.mrb[0].mxu0
    %v454 = vadd.f32 0.0, %v453
    %v455 = vpop.f32.mrb[0].mxu0
    %v456 = vadd.f32 0.0, %v455
    %457 = vmatprep.mubr.f32.mxu0 0.0
    %458 = vmatmul.mubr.f32.gmra.mrb[0].mxu0 %v313
    %v459 = vpop.f32.mrb[0].mxu0
    %v460 = vadd.f32 0.0, %v459
    %v461 = vpop.f32.mrb[0].mxu0
    %v462 = vadd.f32 0.0, %v461
    %463 = vmatprep.mubr.f32.mxu0 0.0
    %464 = vmatmul.mubr.f32.gmra.mrb[0].mxu0 %v316
    %v465 = vpop.f32.mrb[0].mxu0
    %v466 = vadd.f32 0.0, %v465
    %v467 = vpop.f32.mrb[0].mxu0
    %v468 = vadd.f32 0.0, %v467
    %469 = vmatprep.mubr.f32.mxu0 0.0
    %470 = vmatmul.mubr.f32.gmra.mrb[0].mxu0 %v319
    %v471 = vpop.f32.mrb[0].mxu0
    %v472 = vadd.f32 0.0, %v471
    %v473 = vpop.f32.mrb[0].mxu0
    %v474 = vadd.f32 0.0, %v473
    %475 = vmatprep.mubr.f32.mxu0 0.0
    %476 = vmatmul.mubr.f32.gmra.mrb[0].mxu0 %v322
    %v477 = vpop.f32.mrb[0].mxu0
    %v478 = vadd.f32 0.0, %v477
    %v479 = vpop.f32.mrb[0].mxu0
    %v480 = vadd.f32 0.0, %v479
    %481 = vmatprep.mubr.f32.mxu0 0.0
    %482 = vmatmul.mubr.f32.gmra.mrb[0].mxu0 %v325
    %v483 = vpop.f32.mrb[0].mxu0
    %v484 = vadd.f32 0.0, %v483
    %v485 = vpop.f32.mrb[0].mxu0
    %v486 = vadd.f32 0.0, %v485
    %487 = vdwg.mxu0
    %v490 = vcombine.low %v237, %v239
    %v491 = vcombine.high %v237, %v239
    %v493 = vunpack.c.l.s4 1966171168
    %v494 = vunpack.c.0.s8 %v493
    %v495 = vlaneseq
    %v496 = vshrl.u32 %v495, 7
    %v497 = vsub.s32 %v494, %v496
    %v498 = vrot.slane %v490, %v497
    %v500 = vunpack.c.l.s4 1966171168
    %v501 = vunpack.c.0.s8 %v500
    %v502 = vlaneseq
    %v503 = vshrl.u32 %v502, 7
    %v504 = vsub.s32 %v501, %v503
    %v505 = vrot.slane %v491, %v504
    %v506 = vcombine.high %v498, %v498
    %v507 = vcombine.high %v505, %v505
    %v509 = vunpack.c.l.s4 1966171168
    %v510 = vunpack.c.0.s8 %v509
    %v511 = vlaneseq
    %v512 = vshrl.u32 %v511, 7
    %v513 = vsub.s32 %v510, %v512
    %v514 = vrot.slane %v498, %v513
    %v516 = vunpack.c.l.s4 1966171168
    %v517 = vunpack.c.0.s8 %v516
    %v518 = vlaneseq
    %v519 = vshrl.u32 %v518, 7
    %v520 = vsub.s32 %v517, %v519
    %v521 = vrot.slane %v505, %v520
    %v523 = vunpack.c.l.s4 1966171168
    %v524 = vunpack.c.0.s8 %v523
    %v525 = vlaneseq
    %v526 = vshrl.u32 %v525, 7
    %v527 = vsub.s32 %v524, %v526
    %v528 = vrot.slane %v506, %v527
    %v530 = vunpack.c.l.s4 1966171168
    %v531 = vunpack.c.0.s8 %v530
    %v532 = vlaneseq
    %v533 = vshrl.u32 %v532, 7
    %v534 = vsub.s32 %v531, %v533
    %v535 = vrot.slane %v507, %v534
    %v536 = vcombine.high %v514, %v514
    %v537 = vcombine.high %v521, %v521
    %v538 = vcombine.high %v528, %v528
    %v539 = vcombine.high %v535, %v535
    %v540 = vlaneseq
    %v541 = vshrl.u32 %v540, 7
    %v542 = vsub.s32 0, %v541
    %v543 = vrot.slane %v514, %v542
    %v544 = vlaneseq
    %v545 = vshrl.u32 %v544, 7
    %v546 = vsub.s32 1, %v545
    %v547 = vrot.slane %v514, %v546
    %v548 = vlaneseq
    %v549 = vshrl.u32 %v548, 7
    %v550 = vsub.s32 0, %v549
    %v551 = vrot.slane %v528, %v550
    %v552 = vlaneseq
    %v553 = vshrl.u32 %v552, 7
    %v554 = vsub.s32 1, %v553
    %v555 = vrot.slane %v528, %v554
    %v556 = vlaneseq
    %v557 = vshrl.u32 %v556, 7
    %v558 = vsub.s32 0, %v557
    %v559 = vrot.slane %v536, %v558
    %v560 = vlaneseq
    %v561 = vshrl.u32 %v560, 7
    %v562 = vsub.s32 1, %v561
    %v563 = vrot.slane %v536, %v562
    %v564 = vlaneseq
    %v565 = vshrl.u32 %v564, 7
    %v566 = vsub.s32 0, %v565
    %v567 = vrot.slane %v538, %v566
    %v568 = vlaneseq
    %v569 = vshrl.u32 %v568, 7
    %v570 = vsub.s32 1, %v569
    %v571 = vrot.slane %v538, %v570
    %v572 = vlaneseq
    %v573 = vshrl.u32 %v572, 7
    %v574 = vsub.s32 0, %v573
    %v575 = vrot.slane %v521, %v574
    %v576 = vlaneseq
    %v577 = vshrl.u32 %v576, 7
    %v578 = vsub.s32 1, %v577
    %v579 = vrot.slane %v521, %v578
    %v580 = vlaneseq
    %v581 = vshrl.u32 %v580, 7
    %v582 = vsub.s32 0, %v581
    %v583 = vrot.slane %v535, %v582
    %v584 = vlaneseq
    %v585 = vshrl.u32 %v584, 7
    %v586 = vsub.s32 1, %v585
    %v587 = vrot.slane %v535, %v586
    %v588 = vlaneseq
    %v589 = vshrl.u32 %v588, 7
    %v590 = vsub.s32 0, %v589
    %v591 = vrot.slane %v537, %v590
    %v592 = vlaneseq
    %v593 = vshrl.u32 %v592, 7
    %v594 = vsub.s32 1, %v593
    %v595 = vrot.slane %v537, %v594
    %v596 = vlaneseq
    %v597 = vshrl.u32 %v596, 7
    %v598 = vsub.s32 0, %v597
    %v599 = vrot.slane %v539, %v598
    %v600 = vlaneseq
    %v601 = vshrl.u32 %v600, 7
    %v602 = vsub.s32 1, %v601
    %v603 = vrot.slane %v539, %v602
    %v620 = vadd.f32 %v394, %v543
    %v621 = vadd.f32 %v396, %v547
    %v622 = vadd.f32 %v400, %v543
    %v623 = vadd.f32 %v402, %v547
    %v624 = vadd.f32 %v406, %v551
    %v625 = vadd.f32 %v408, %v555
    %v626 = vadd.f32 %v412, %v551
    %v627 = vadd.f32 %v414, %v555
    %v628 = vadd.f32 %v418, %v559
    %v629 = vadd.f32 %v420, %v563
    %v630 = vadd.f32 %v424, %v559
    %v631 = vadd.f32 %v426, %v563
    %v632 = vadd.f32 %v430, %v567
    %v633 = vadd.f32 %v432, %v571
    %v634 = vadd.f32 %v436, %v567
    %v635 = vadd.f32 %v438, %v571
    %v636 = vadd.f32 %v442, %v575
    %v637 = vadd.f32 %v444, %v579
    %v638 = vadd.f32 %v448, %v575
    %v639 = vadd.f32 %v450, %v579
    %v640 = vadd.f32 %v454, %v583
    %v641 = vadd.f32 %v456, %v587
    %v642 = vadd.f32 %v460, %v583
    %v643 = vadd.f32 %v462, %v587
    %v644 = vadd.f32 %v466, %v591
    %v645 = vadd.f32 %v468, %v595
    %v646 = vadd.f32 %v472, %v591
    %v647 = vadd.f32 %v474, %v595
    %v648 = vadd.f32 %v478, %v599
    %v649 = vadd.f32 %v480, %v603
    %v650 = vadd.f32 %v484, %v599
    %v651 = vadd.f32 %v486, %v603
    %v654 = vcombine.low %v250, %v251
    %v655 = vcombine.high %v250, %v251
    %v657 = vunpack.c.l.s4 1966171168
    %v658 = vunpack.c.0.s8 %v657
    %v659 = vlaneseq
    %v660 = vshrl.u32 %v659, 7
    %v661 = vsub.s32 %v658, %v660
    %v662 = vrot.slane %v654, %v661
    %v664 = vunpack.c.l.s4 1966171168
    %v665 = vunpack.c.0.s8 %v664
    %v666 = vlaneseq
    %v667 = vshrl.u32 %v666, 7
    %v668 = vsub.s32 %v665, %v667
    %v669 = vrot.slane %v655, %v668
    %v670 = vcombine.high %v662, %v662
    %v671 = vcombine.high %v669, %v669
    %v673 = vunpack.c.l.s4 1966171168
    %v674 = vunpack.c.0.s8 %v673
    %v675 = vlaneseq
    %v676 = vshrl.u32 %v675, 7
    %v677 = vsub.s32 %v674, %v676
    %v678 = vrot.slane %v662, %v677
    %v680 = vunpack.c.l.s4 1966171168
    %v681 = vunpack.c.0.s8 %v680
    %v682 = vlaneseq
    %v683 = vshrl.u32 %v682, 7
    %v684 = vsub.s32 %v681, %v683
    %v685 = vrot.slane %v669, %v684
    %v687 = vunpack.c.l.s4 1966171168
    %v688 = vunpack.c.0.s8 %v687
    %v689 = vlaneseq
    %v690 = vshrl.u32 %v689, 7
    %v691 = vsub.s32 %v688, %v690
    %v692 = vrot.slane %v670, %v691
    %v694 = vunpack.c.l.s4 1966171168
    %v695 = vunpack.c.0.s8 %v694
    %v696 = vlaneseq
    %v697 = vshrl.u32 %v696, 7
    %v698 = vsub.s32 %v695, %v697
    %v699 = vrot.slane %v671, %v698
    %v700 = vcombine.high %v678, %v678
    %v701 = vcombine.high %v685, %v685
    %v702 = vcombine.high %v692, %v692
    %v703 = vcombine.high %v699, %v699
    %v704 = vlaneseq
    %v705 = vshrl.u32 %v704, 7
    %v706 = vsub.s32 0, %v705
    %v707 = vrot.slane %v678, %v706
    %v708 = vlaneseq
    %v709 = vshrl.u32 %v708, 7
    %v710 = vsub.s32 1, %v709
    %v711 = vrot.slane %v678, %v710
    %v712 = vlaneseq
    %v713 = vshrl.u32 %v712, 7
    %v714 = vsub.s32 0, %v713
    %v715 = vrot.slane %v692, %v714
    %v716 = vlaneseq
    %v717 = vshrl.u32 %v716, 7
    %v718 = vsub.s32 1, %v717
    %v719 = vrot.slane %v692, %v718
    %v720 = vlaneseq
    %v721 = vshrl.u32 %v720, 7
    %v722 = vsub.s32 0, %v721
    %v723 = vrot.slane %v700, %v722
    %v724 = vlaneseq
    %v725 = vshrl.u32 %v724, 7
    %v726 = vsub.s32 1, %v725
    %v727 = vrot.slane %v700, %v726
    %v728 = vlaneseq
    %v729 = vshrl.u32 %v728, 7
    %v730 = vsub.s32 0, %v729
    %v731 = vrot.slane %v702, %v730
    %v732 = vlaneseq
    %v733 = vshrl.u32 %v732, 7
    %v734 = vsub.s32 1, %v733
    %v735 = vrot.slane %v702, %v734
    %v736 = vlaneseq
    %v737 = vshrl.u32 %v736, 7
    %v738 = vsub.s32 0, %v737
    %v739 = vrot.slane %v685, %v738
    %v740 = vlaneseq
    %v741 = vshrl.u32 %v740, 7
    %v742 = vsub.s32 1, %v741
    %v743 = vrot.slane %v685, %v742
    %v744 = vlaneseq
    %v745 = vshrl.u32 %v744, 7
    %v746 = vsub.s32 0, %v745
    %v747 = vrot.slane %v699, %v746
    %v748 = vlaneseq
    %v749 = vshrl.u32 %v748, 7
    %v750 = vsub.s32 1, %v749
    %v751 = vrot.slane %v699, %v750
    %v752 = vlaneseq
    %v753 = vshrl.u32 %v752, 7
    %v754 = vsub.s32 0, %v753
    %v755 = vrot.slane %v701, %v754
    %v756 = vlaneseq
    %v757 = vshrl.u32 %v756, 7
    %v758 = vsub.s32 1, %v757
    %v759 = vrot.slane %v701, %v758
    %v760 = vlaneseq
    %v761 = vshrl.u32 %v760, 7
    %v762 = vsub.s32 0, %v761
    %v763 = vrot.slane %v703, %v762
    %v764 = vlaneseq
    %v765 = vshrl.u32 %v764, 7
    %v766 = vsub.s32 1, %v765
    %v767 = vrot.slane %v703, %v766
    %v784 = vmul.f32 %v620, %v707
    %v785 = vmul.f32 %v621, %v711
    %v786 = vmul.f32 %v622, %v707
    %v787 = vmul.f32 %v623, %v711
    %v788 = vmul.f32 %v624, %v715
    %v789 = vmul.f32 %v625, %v719
    %v790 = vmul.f32 %v626, %v715
    %v791 = vmul.f32 %v627, %v719
    %v792 = vmul.f32 %v628, %v723
    %v793 = vmul.f32 %v629, %v727
    %v794 = vmul.f32 %v630, %v723
    %v795 = vmul.f32 %v631, %v727
    %v796 = vmul.f32 %v632, %v731
    %v797 = vmul.f32 %v633, %v735
    %v798 = vmul.f32 %v634, %v731
    %v799 = vmul.f32 %v635, %v735
    %v800 = vmul.f32 %v636, %v739
    %v801 = vmul.f32 %v637, %v743
    %v802 = vmul.f32 %v638, %v739
    %v803 = vmul.f32 %v639, %v743
    %v804 = vmul.f32 %v640, %v747
    %v805 = vmul.f32 %v641, %v751
    %v806 = vmul.f32 %v642, %v747
    %v807 = vmul.f32 %v643, %v751
    %v808 = vmul.f32 %v644, %v755
    %v809 = vmul.f32 %v645, %v759
    %v810 = vmul.f32 %v646, %v755
    %v811 = vmul.f32 %v647, %v759
    %v812 = vmul.f32 %v648, %v763
    %v813 = vmul.f32 %v649, %v767
    %v814 = vmul.f32 %v650, %v763
    %v815 = vmul.f32 %v651, %v767
    %v816 = vld [vmem:[%s8] sm:$0xff]
    %v817 = vld [vmem:[%s4] sm:$0xff]
    %v818 = vld [vmem:[%s4 + $0x8] sm:$0xff]
    %v819 = vld [vmem:[%s4 + $0x10] sm:$0xff]
    %v820 = vld [vmem:[%s4 + $0x18] sm:$0xff]
    %v821 = vld [vmem:[%s4 + $0x20] sm:$0xff]
    %v822 = vld [vmem:[%s4 + $0x28] sm:$0xff]
    %v823 = vld [vmem:[%s4 + $0x30] sm:$0xff]
    %v824 = vld [vmem:[%s4 + $0x38] sm:$0xff]
    %v825 = vld [vmem:[%s4 + $0x40] sm:$0xff]
    %v826 = vld [vmem:[%s4 + $0x48] sm:$0xff]
    %v827 = vld [vmem:[%s4 + $0x50] sm:$0xff]
    %v828 = vld [vmem:[%s4 + $0x58] sm:$0xff]
    %v829 = vld [vmem:[%s4 + $0x60] sm:$0xff]
    %v830 = vld [vmem:[%s4 + $0x68] sm:$0xff]
    %v831 = vld [vmem:[%s4 + $0x70] sm:$0xff]
    %v832 = vld [vmem:[%s4 + $0x78] sm:$0xff]
    %v833 = vld [vmem:[%s4 + $0x80] sm:$0xff]
    %v834 = vlaneseq
    %v835 = vshrl.u32 %v834, 7
    %v836 = vsub.s32 0, %v835
    %v837 = vrot.slane %v816, %v836
    %vm838 = vcmask 64512
    %v840 = vsel %vm838, %v785, 0
    %v843 = vsel %vm838, %v787, 0
    %v846 = vsel %vm838, %v789, 0
    %v849 = vsel %vm838, %v791, 0
    %v852 = vsel %vm838, %v793, 0
    %v855 = vsel %vm838, %v795, 0
    %v858 = vsel %vm838, %v797, 0
    %v861 = vsel %vm838, %v799, 0
    %v864 = vsel %vm838, %v801, 0
    %v867 = vsel %vm838, %v803, 0
    %v870 = vsel %vm838, %v805, 0
    %v873 = vsel %vm838, %v807, 0
    %v876 = vsel %vm838, %v809, 0
    %v879 = vsel %vm838, %v811, 0
    %v882 = vsel %vm838, %v813, 0
    %v885 = vsel %vm838, %v815, 0
    %887 = vmatprep.subr.mxu0 0.0
    %888 = vmatpush1.msra.mxu0 %v817
    %889 = vmatprep.subr.mxu0 0.0
    %890 = vmatpush1.msra.mxu0 %v818
    %891 = vmatprep.subr.mxu0 0.0
    %892 = vmatpush1.msra.mxu0 %v819
    %893 = vmatprep.subr.mxu0 0.0
    %894 = vmatpush1.msra.mxu0 %v820
    %895 = vmatprep.subr.mxu0 0.0
    %896 = vmatpush1.msra.mxu0 %v821
    %897 = vmatprep.subr.mxu0 0.0
    %898 = vmatpush1.msra.mxu0 %v822
    %899 = vmatprep.subr.mxu0 0.0
    %900 = vmatpush1.msra.mxu0 %v823
    %901 = vmatprep.subr.mxu0 0.0
    %902 = vmatpush1.msra.mxu0 %v824
    %903 = vmatprep.subr.mxu0 0.0
    %904 = vmatpush1.msra.mxu0 %v825
    %905 = vmatprep.subr.mxu0 0.0
    %906 = vmatpush1.msra.mxu0 %v826
    %907 = vmatprep.subr.mxu0 0.0
    %908 = vmatpush1.msra.mxu0 %v827
    %909 = vmatprep.subr.mxu0 0.0
    %910 = vmatpush1.msra.mxu0 %v828
    %911 = vmatprep.subr.mxu0 0.0
    %912 = vmatpush1.msra.mxu0 %v829
    %913 = vmatprep.subr.mxu0 0.0
    %914 = vmatpush1.msra.mxu0 %v830
    %915 = vmatprep.subr.mxu0 0.0
    %916 = vmatpush1.msra.mxu0 %v831
    %917 = vmatprep.subr.mxu0 0.0
    %918 = vmatpush1.msra.mxu0 %v832
    %919 = vmatprep.subr.mxu0 0.0
    %920 = vmatpush1.msra.mxu0 %v833
    %921 = vmatprep.subr.mxu0 0.0
    %922 = vmatpush1.msra.mxu0 0.0
    %923 = vmatprep.subr.mxu0 0.0
    %924 = vmatpush1.msra.mxu0 0.0
    %925 = vmatprep.subr.mxu0 0.0
    %926 = vmatpush1.msra.mxu0 0.0
    %927 = vmatprep.subr.mxu0 0.0
    %928 = vmatpush1.msra.mxu0 0.0
    %929 = vmatprep.subr.mxu0 0.0
    %930 = vmatpush1.msra.mxu0 0.0
    %931 = vmatprep.subr.mxu0 0.0
    %932 = vmatpush1.msra.mxu0 0.0
    %933 = vmatprep.subr.mxu0 0.0
    %934 = vmatpush1.msra.mxu0 0.0
    %935 = vmatprep.subr.mxu0 0.0
    %936 = vmatpush1.msra.mxu0 0.0
    %937 = vmatprep.subr.mxu0 0.0
    %938 = vmatpush1.msra.mxu0 0.0
    %939 = vmatprep.subr.mxu0 0.0
    %940 = vmatpush1.msra.mxu0 0.0
    %941 = vmatprep.subr.mxu0 0.0
    %942 = vmatpush1.msra.mxu0 0.0
    %943 = vmatprep.subr.mxu0 0.0
    %944 = vmatpush1.msra.mxu0 0.0
    %945 = vmatprep.subr.mxu0 0.0
    %946 = vmatpush1.msra.mxu0 0.0
    %947 = vmatprep.subr.mxu0 0.0
    %948 = vmatpush1.msra.mxu0 0.0
    %949 = vmatprep.subr.mxu0 0.0
    %950 = vmatpush1.msra.mxu0 0.0
    %951 = vmatprep.mubr.f32.mxu0 %v840
    %952 = vmatmul.mubr.f32.gmra.mrb[0].mxu0 %v784
    %v953 = vpop.f32.mrb[0].mxu0
    %v954 = vadd.f32 %v837, %v953
    %v955 = vpop.f32.mrb[0].mxu0
    %956 = vmatprep.mubr.f32.mxu0 %v843
    %957 = vmatmul.mubr.f32.gmra.mrb[0].mxu0 %v786
    %v958 = vpop.f32.mrb[0].mxu0
    %v959 = vadd.f32 %v837, %v958
    %v960 = vpop.f32.mrb[0].mxu0
    %961 = vmatprep.mubr.f32.mxu0 %v846
    %962 = vmatmul.mubr.f32.gmra.mrb[0].mxu0 %v788
    %v963 = vpop.f32.mrb[0].mxu0
    %v964 = vadd.f32 %v837, %v963
    %v965 = vpop.f32.mrb[0].mxu0
    %966 = vmatprep.mubr.f32.mxu0 %v849
    %967 = vmatmul.mubr.f32.gmra.mrb[0].mxu0 %v790
    %v968 = vpop.f32.mrb[0].mxu0
    %v969 = vadd.f32 %v837, %v968
    %v970 = vpop.f32.mrb[0].mxu0
    %971 = vmatprep.mubr.f32.mxu0 %v852
    %972 = vmatmul.mubr.f32.gmra.mrb[0].mxu0 %v792
    %v973 = vpop.f32.mrb[0].mxu0
    %v974 = vadd.f32 %v837, %v973
    %v975 = vpop.f32.mrb[0].mxu0
    %976 = vmatprep.mubr.f32.mxu0 %v855
    %977 = vmatmul.mubr.f32.gmra.mrb[0].mxu0 %v794
    %v978 = vpop.f32.mrb[0].mxu0
    %v979 = vadd.f32 %v837, %v978
    %v980 = vpop.f32.mrb[0].mxu0
    %981 = vmatprep.mubr.f32.mxu0 %v858
    %982 = vmatmul.mubr.f32.gmra.mrb[0].mxu0 %v796
    %v983 = vpop.f32.mrb[0].mxu0
    %v984 = vadd.f32 %v837, %v983
    %v985 = vpop.f32.mrb[0].mxu0
    %986 = vmatprep.mubr.f32.mxu0 %v861
    %987 = vmatmul.mubr.f32.gmra.mrb[0].mxu0 %v798
    %v988 = vpop.f32.mrb[0].mxu0
    %v989 = vadd.f32 %v837, %v988
    %v990 = vpop.f32.mrb[0].mxu0
    %991 = vmatprep.mubr.f32.mxu0 %v864
    %992 = vmatmul.mubr.f32.gmra.mrb[0].mxu0 %v800
    %v993 = vpop.f32.mrb[0].mxu0
    %v994 = vadd.f32 %v837, %v993
    %v995 = vpop.f32.mrb[0].mxu0
    %996 = vmatprep.mubr.f32.mxu0 %v867
    %997 = vmatmul.mubr.f32.gmra.mrb[0].mxu0 %v802
    %v998 = vpop.f32.mrb[0].mxu0
    %v999 = vadd.f32 %v837, %v998
    %v1000 = vpop.f32.mrb[0].mxu0
    %1001 = vmatprep.mubr.f32.mxu0 %v870
    %1002 = vmatmul.mubr.f32.gmra.mrb[0].mxu0 %v804
    %v1003 = vpop.f32.mrb[0].mxu0
    %v1004 = vadd.f32 %v837, %v1003
    %v1005 = vpop.f32.mrb[0].mxu0
    %1006 = vmatprep.mubr.f32.mxu0 %v873
    %1007 = vmatmul.mubr.f32.gmra.mrb[0].mxu0 %v806
    %v1008 = vpop.f32.mrb[0].mxu0
    %v1009 = vadd.f32 %v837, %v1008
    %v1010 = vpop.f32.mrb[0].mxu0
    %1011 = vmatprep.mubr.f32.mxu0 %v876
    %1012 = vmatmul.mubr.f32.gmra.mrb[0].mxu0 %v808
    %v1013 = vpop.f32.mrb[0].mxu0
    %v1014 = vadd.f32 %v837, %v1013
    %v1015 = vpop.f32.mrb[0].mxu0
    %1016 = vmatprep.mubr.f32.mxu0 %v879
    %1017 = vmatmul.mubr.f32.gmra.mrb[0].mxu0 %v810
    %v1018 = vpop.f32.mrb[0].mxu0
    %v1019 = vadd.f32 %v837, %v1018
    %v1020 = vpop.f32.mrb[0].mxu0
    %1021 = vmatprep.mubr.f32.mxu0 %v882
    %1022 = vmatmul.mubr.f32.gmra.mrb[0].mxu0 %v812
    %v1023 = vpop.f32.mrb[0].mxu0
    %v1024 = vadd.f32 %v837, %v1023
    %v1025 = vpop.f32.mrb[0].mxu0
    %1026 = vmatprep.mubr.f32.mxu0 %v885
    %1027 = vmatmul.mubr.f32.gmra.mrb[0].mxu0 %v814
    %v1028 = vpop.f32.mrb[0].mxu0
    %v1029 = vadd.f32 %v837, %v1028
    %v1030 = vpop.f32.mrb[0].mxu0
    %1031 = vdwg.mxu0
    %v1032 = vmax.f32 %v954, 0.0
    %v1033 = vmax.f32 %v959, 0.0
    %v1034 = vmax.f32 %v964, 0.0
    %v1035 = vmax.f32 %v969, 0.0
    %v1036 = vmax.f32 %v974, 0.0
    %v1037 = vmax.f32 %v979, 0.0
    %v1038 = vmax.f32 %v984, 0.0
    %v1039 = vmax.f32 %v989, 0.0
    %v1040 = vmax.f32 %v994, 0.0
    %v1041 = vmax.f32 %v999, 0.0
    %v1042 = vmax.f32 %v1004, 0.0
    %v1043 = vmax.f32 %v1009, 0.0
    %v1044 = vmax.f32 %v1014, 0.0
    %v1045 = vmax.f32 %v1019, 0.0
    %v1046 = vmax.f32 %v1024, 0.0
    %v1047 = vmax.f32 %v1029, 0.0
    %v1048 = vld [vmem:[%s5] sm:$0xff]
    %v1049 = vld [vmem:[%s5 + $0x8] sm:$0xff]
    %v1050 = vld [vmem:[%s5 + $0x10] sm:$0xff]
    %v1051 = vld [vmem:[%s5 + $0x18] sm:$0xff]
    %v1052 = vld [vmem:[%s5 + $0x20] sm:$0xff]
    %v1053 = vld [vmem:[%s5 + $0x28] sm:$0xff]
    %v1054 = vld [vmem:[%s5 + $0x30] sm:$0xff]
    %v1055 = vld [vmem:[%s5 + $0x38] sm:$0xff]
    %v1056 = vlaneseq
    %v1057 = vshrl.u32 %v1056, 7
    %v1058 = vsub.s32 1, %v1057
    %v1059 = vrot.slane %v816, %v1058
    %vm1060 = vcmask 523264
    %v1062 = vsel %vm1060, %v1032, 0
    %v1065 = vsel %vm1060, %v1033, 0
    %v1068 = vsel %vm1060, %v1034, 0
    %v1071 = vsel %vm1060, %v1035, 0
    %v1074 = vsel %vm1060, %v1036, 0
    %v1077 = vsel %vm1060, %v1037, 0
    %v1080 = vsel %vm1060, %v1038, 0
    %v1083 = vsel %vm1060, %v1039, 0
    %v1086 = vsel %vm1060, %v1040, 0
    %v1089 = vsel %vm1060, %v1041, 0
    %v1092 = vsel %vm1060, %v1042, 0
    %v1095 = vsel %vm1060, %v1043, 0
    %v1098 = vsel %vm1060, %v1044, 0
    %v1101 = vsel %vm1060, %v1045, 0
    %v1104 = vsel %vm1060, %v1046, 0
    %v1107 = vsel %vm1060, %v1047, 0
    %1109 = vmatprep.subr.mxu0 0.0
    %1110 = vmatpush1.msra.mxu0 %v1048
    %1111 = vmatprep.subr.mxu0 0.0
    %1112 = vmatpush1.msra.mxu0 %v1049
    %1113 = vmatprep.subr.mxu0 0.0
    %1114 = vmatpush1.msra.mxu0 %v1050
    %1115 = vmatprep.subr.mxu0 0.0
    %1116 = vmatpush1.msra.mxu0 %v1051
    %1117 = vmatprep.subr.mxu0 0.0
    %1118 = vmatpush1.msra.mxu0 %v1052
    %1119 = vmatprep.subr.mxu0 0.0
    %1120 = vmatpush1.msra.mxu0 %v1053
    %1121 = vmatprep.subr.mxu0 0.0
    %1122 = vmatpush1.msra.mxu0 %v1054
    %1123 = vmatprep.subr.mxu0 0.0
    %1124 = vmatpush1.msra.mxu0 %v1055
    %1125 = vmatprep.subr.mxu0 0.0
    %1126 = vmatpush1.msra.mxu0 0.0
    %1127 = vmatprep.subr.mxu0 0.0
    %1128 = vmatpush1.msra.mxu0 0.0
    %1129 = vmatprep.subr.mxu0 0.0
    %1130 = vmatpush1.msra.mxu0 0.0
    %1131 = vmatprep.subr.mxu0 0.0
    %1132 = vmatpush1.msra.mxu0 0.0
    %1133 = vmatprep.subr.mxu0 0.0
    %1134 = vmatpush1.msra.mxu0 0.0
    %1135 = vmatprep.subr.mxu0 0.0
    %1136 = vmatpush1.msra.mxu0 0.0
    %1137 = vmatprep.subr.mxu0 0.0
    %1138 = vmatpush1.msra.mxu0 0.0
    %1139 = vmatprep.subr.mxu0 0.0
    %1140 = vmatpush1.msra.mxu0 0.0
    %1141 = vmatprep.subr.mxu0 0.0
    %1142 = vmatpush1.msra.mxu0 0.0
    %1143 = vmatprep.subr.mxu0 0.0
    %1144 = vmatpush1.msra.mxu0 0.0
    %1145 = vmatprep.subr.mxu0 0.0
    %1146 = vmatpush1.msra.mxu0 0.0
    %1147 = vmatprep.subr.mxu0 0.0
    %1148 = vmatpush1.msra.mxu0 0.0
    %1149 = vmatprep.subr.mxu0 0.0
    %1150 = vmatpush1.msra.mxu0 0.0
    %1151 = vmatprep.subr.mxu0 0.0
    %1152 = vmatpush1.msra.mxu0 0.0
    %1153 = vmatprep.subr.mxu0 0.0
    %1154 = vmatpush1.msra.mxu0 0.0
    %1155 = vmatprep.subr.mxu0 0.0
    %1156 = vmatpush1.msra.mxu0 0.0
    %1157 = vmatprep.subr.mxu0 0.0
    %1158 = vmatpush1.msra.mxu0 0.0
    %1159 = vmatprep.subr.mxu0 0.0
    %1160 = vmatpush1.msra.mxu0 0.0
    %1161 = vmatprep.subr.mxu0 0.0
    %1162 = vmatpush1.msra.mxu0 0.0
    %1163 = vmatprep.subr.mxu0 0.0
    %1164 = vmatpush1.msra.mxu0 0.0
    %1165 = vmatprep.subr.mxu0 0.0
    %1166 = vmatpush1.msra.mxu0 0.0
    %1167 = vmatprep.subr.mxu0 0.0
    %1168 = vmatpush1.msra.mxu0 0.0
    %1169 = vmatprep.subr.mxu0 0.0
    %1170 = vmatpush1.msra.mxu0 0.0
    %1171 = vmatprep.subr.mxu0 0.0
    %1172 = vmatpush1.msra.mxu0 0.0
    %1173 = vmatprep.mubr.f32.mxu0 0.0
    %1174 = vmatmul.mubr.f32.gmra.mrb[0].mxu0 %v1062
    %v1175 = vpop.f32.mrb[0].mxu0
    %v1176 = vadd.f32 %v1059, %v1175
    %v1177 = vpop.f32.mrb[0].mxu0
    %1178 = vmatprep.mubr.f32.mxu0 0.0
    %1179 = vmatmul.mubr.f32.gmra.mrb[0].mxu0 %v1065
    %v1180 = vpop.f32.mrb[0].mxu0
    %v1181 = vadd.f32 %v1059, %v1180
    %v1182 = vpop.f32.mrb[0].mxu0
    %1183 = vmatprep.mubr.f32.mxu0 0.0
    %1184 = vmatmul.mubr.f32.gmra.mrb[0].mxu0 %v1068
    %v1185 = vpop.f32.mrb[0].mxu0
    %v1186 = vadd.f32 %v1059, %v1185
    %v1187 = vpop.f32.mrb[0].mxu0
    %1188 = vmatprep.mubr.f32.mxu0 0.0
    %1189 = vmatmul.mubr.f32.gmra.mrb[0].mxu0 %v1071
    %v1190 = vpop.f32.mrb[0].mxu0
    %v1191 = vadd.f32 %v1059, %v1190
    %v1192 = vpop.f32.mrb[0].mxu0
    %1193 = vmatprep.mubr.f32.mxu0 0.0
    %1194 = vmatmul.mubr.f32.gmra.mrb[0].mxu0 %v1074
    %v1195 = vpop.f32.mrb[0].mxu0
    %v1196 = vadd.f32 %v1059, %v1195
    %v1197 = vpop.f32.mrb[0].mxu0
    %1198 = vmatprep.mubr.f32.mxu0 0.0
    %1199 = vmatmul.mubr.f32.gmra.mrb[0].mxu0 %v1077
    %v1200 = vpop.f32.mrb[0].mxu0
    %v1201 = vadd.f32 %v1059, %v1200
    %v1202 = vpop.f32.mrb[0].mxu0
    %1203 = vmatprep.mubr.f32.mxu0 0.0
    %1204 = vmatmul.mubr.f32.gmra.mrb[0].mxu0 %v1080
    %v1205 = vpop.f32.mrb[0].mxu0
    %v1206 = vadd.f32 %v1059, %v1205
    %v1207 = vpop.f32.mrb[0].mxu0
    %1208 = vmatprep.mubr.f32.mxu0 0.0
    %1209 = vmatmul.mubr.f32.gmra.mrb[0].mxu0 %v1083
    %v1210 = vpop.f32.mrb[0].mxu0
    %v1211 = vadd.f32 %v1059, %v1210
    %v1212 = vpop.f32.mrb[0].mxu0
    %1213 = vmatprep.mubr.f32.mxu0 0.0
    %1214 = vmatmul.mubr.f32.gmra.mrb[0].mxu0 %v1086
    %v1215 = vpop.f32.mrb[0].mxu0
    %v1216 = vadd.f32 %v1059, %v1215
    %v1217 = vpop.f32.mrb[0].mxu0
    %1218 = vmatprep.mubr.f32.mxu0 0.0
    %1219 = vmatmul.mubr.f32.gmra.mrb[0].mxu0 %v1089
    %v1220 = vpop.f32.mrb[0].mxu0
    %v1221 = vadd.f32 %v1059, %v1220
    %v1222 = vpop.f32.mrb[0].mxu0
    %1223 = vmatprep.mubr.f32.mxu0 0.0
    %1224 = vmatmul.mubr.f32.gmra.mrb[0].mxu0 %v1092
    %v1225 = vpop.f32.mrb[0].mxu0
    %v1226 = vadd.f32 %v1059, %v1225
    %v1227 = vpop.f32.mrb[0].mxu0
    %1228 = vmatprep.mubr.f32.mxu0 0.0
    %1229 = vmatmul.mubr.f32.gmra.mrb[0].mxu0 %v1095
    %v1230 = vpop.f32.mrb[0].mxu0
    %v1231 = vadd.f32 %v1059, %v1230
    %v1232 = vpop.f32.mrb[0].mxu0
    %1233 = vmatprep.mubr.f32.mxu0 0.0
    %1234 = vmatmul.mubr.f32.gmra.mrb[0].mxu0 %v1098
    %v1235 = vpop.f32.mrb[0].mxu0
    %v1236 = vadd.f32 %v1059, %v1235
    %v1237 = vpop.f32.mrb[0].mxu0
    %1238 = vmatprep.mubr.f32.mxu0 0.0
    %1239 = vmatmul.mubr.f32.gmra.mrb[0].mxu0 %v1101
    %v1240 = vpop.f32.mrb[0].mxu0
    %v1241 = vadd.f32 %v1059, %v1240
    %v1242 = vpop.f32.mrb[0].mxu0
    %1243 = vmatprep.mubr.f32.mxu0 0.0
    %1244 = vmatmul.mubr.f32.gmra.mrb[0].mxu0 %v1104
    %v1245 = vpop.f32.mrb[0].mxu0
    %v1246 = vadd.f32 %v1059, %v1245
    %v1247 = vpop.f32.mrb[0].mxu0
    %1248 = vmatprep.mubr.f32.mxu0 0.0
    %1249 = vmatmul.mubr.f32.gmra.mrb[0].mxu0 %v1107
    %v1250 = vpop.f32.mrb[0].mxu0
    %v1251 = vadd.f32 %v1059, %v1250
    %v1252 = vpop.f32.mrb[0].mxu0
    %1253 = vdwg.mxu0
    %v1254 = vmax.f32 %v1176, 0.0
    %v1255 = vmax.f32 %v1181, 0.0
    %v1256 = vmax.f32 %v1186, 0.0
    %v1257 = vmax.f32 %v1191, 0.0
    %v1258 = vmax.f32 %v1196, 0.0
    %v1259 = vmax.f32 %v1201, 0.0
    %v1260 = vmax.f32 %v1206, 0.0
    %v1261 = vmax.f32 %v1211, 0.0
    %v1262 = vmax.f32 %v1216, 0.0
    %v1263 = vmax.f32 %v1221, 0.0
    %v1264 = vmax.f32 %v1226, 0.0
    %v1265 = vmax.f32 %v1231, 0.0
    %v1266 = vmax.f32 %v1236, 0.0
    %v1267 = vmax.f32 %v1241, 0.0
    %v1268 = vmax.f32 %v1246, 0.0
    %v1269 = vmax.f32 %v1251, 0.0
    %v1270 = vld [vmem:[%s6] sm:$0xff]
    %v1271 = vld [vmem:[%s6 + $0x8] sm:$0xff]
    %v1272 = vmul.f32 %v1254, %v1270
    %v1273 = vmul.f32 %v1255, %v1271
    %v1274 = vmul.f32 %v1256, %v1270
    %v1275 = vmul.f32 %v1257, %v1271
    %v1276 = vmul.f32 %v1258, %v1270
    %v1277 = vmul.f32 %v1259, %v1271
    %v1278 = vmul.f32 %v1260, %v1270
    %v1279 = vmul.f32 %v1261, %v1271
    %v1280 = vmul.f32 %v1262, %v1270
    %v1281 = vmul.f32 %v1263, %v1271
    %v1282 = vmul.f32 %v1264, %v1270
    %v1283 = vmul.f32 %v1265, %v1271
    %v1284 = vmul.f32 %v1266, %v1270
    %v1285 = vmul.f32 %v1267, %v1271
    %v1286 = vmul.f32 %v1268, %v1270
    %v1287 = vmul.f32 %v1269, %v1271
    %v1288 = vsel %vm1060, %v1272, 0.0
    %1289 = vadd.xlane.f32.xlu0 %v1288
    %v1290 = vpop.xlane.xlu0 %1289
    %v1291 = vsel %vm1060, %v1273, 0.0
    %1292 = vadd.xlane.f32.xlu0 %v1291
    %v1293 = vpop.xlane.xlu0 %1292
    %v1294 = vsel %vm1060, %v1274, 0.0
    %1295 = vadd.xlane.f32.xlu0 %v1294
    %v1296 = vpop.xlane.xlu0 %1295
    %v1297 = vsel %vm1060, %v1275, 0.0
    %1298 = vadd.xlane.f32.xlu0 %v1297
    %v1299 = vpop.xlane.xlu0 %1298
    %v1300 = vsel %vm1060, %v1276, 0.0
    %1301 = vadd.xlane.f32.xlu0 %v1300
    %v1302 = vpop.xlane.xlu0 %1301
    %v1303 = vsel %vm1060, %v1277, 0.0
    %1304 = vadd.xlane.f32.xlu0 %v1303
    %v1305 = vpop.xlane.xlu0 %1304
    %v1306 = vsel %vm1060, %v1278, 0.0
    %1307 = vadd.xlane.f32.xlu0 %v1306
    %v1308 = vpop.xlane.xlu0 %1307
    %v1309 = vsel %vm1060, %v1279, 0.0
    %1310 = vadd.xlane.f32.xlu0 %v1309
    %v1311 = vpop.xlane.xlu0 %1310
    %v1312 = vsel %vm1060, %v1280, 0.0
    %1313 = vadd.xlane.f32.xlu0 %v1312
    %v1314 = vpop.xlane.xlu0 %1313
    %v1315 = vsel %vm1060, %v1281, 0.0
    %1316 = vadd.xlane.f32.xlu0 %v1315
    %v1317 = vpop.xlane.xlu0 %1316
    %v1318 = vsel %vm1060, %v1282, 0.0
    %1319 = vadd.xlane.f32.xlu0 %v1318
    %v1320 = vpop.xlane.xlu0 %1319
    %v1321 = vsel %vm1060, %v1283, 0.0
    %1322 = vadd.xlane.f32.xlu0 %v1321
    %v1323 = vpop.xlane.xlu0 %1322
    %v1324 = vsel %vm1060, %v1284, 0.0
    %1325 = vadd.xlane.f32.xlu0 %v1324
    %v1326 = vpop.xlane.xlu0 %1325
    %v1327 = vsel %vm1060, %v1285, 0.0
    %1328 = vadd.xlane.f32.xlu0 %v1327
    %v1329 = vpop.xlane.xlu0 %1328
    %v1330 = vsel %vm1060, %v1286, 0.0
    %1331 = vadd.xlane.f32.xlu0 %v1330
    %v1332 = vpop.xlane.xlu0 %1331
    %v1333 = vsel %vm1060, %v1287, 0.0
    %1334 = vadd.xlane.f32.xlu0 %v1333
    %v1335 = vpop.xlane.xlu0 %1334
    %v1336 = vld [vmem:[%s7] sm:$0x1]
    %v1338 = vlaneseq
    %v1339 = vshrl.u32 %v1338, 7
    %v1340 = vsub.s32 0, %v1339
    %v1341 = vrot.slane %v1336, %v1340
    %1343 = vbcast.lane.b32.xlu0 %v1341, 256
    %v1344 = vpop.permute.xlu0 %1343
    %s1346 = sor.u32 256, 8
    %1347 = vbcast.lane.b32.xlu0 %v1341, %s1346
    %v1348 = vpop.permute.xlu0 %1347
    %v1351 = vadd.f32 %v1290, %v1344
    %v1352 = vadd.f32 %v1293, %v1348
    %v1353 = vadd.f32 %v1296, %v1344
    %v1354 = vadd.f32 %v1299, %v1348
    %v1355 = vadd.f32 %v1302, %v1344
    %v1356 = vadd.f32 %v1305, %v1348
    %v1357 = vadd.f32 %v1308, %v1344
    %v1358 = vadd.f32 %v1311, %v1348
    %v1359 = vadd.f32 %v1314, %v1344
    %v1360 = vadd.f32 %v1317, %v1348
    %v1361 = vadd.f32 %v1320, %v1344
    %v1362 = vadd.f32 %v1323, %v1348
    %v1363 = vadd.f32 %v1326, %v1344
    %v1364 = vadd.f32 %v1329, %v1348
    %v1365 = vadd.f32 %v1332, %v1344
    %v1366 = vadd.f32 %v1335, %v1348
    %v1367 = vtanh.pop %v1351
    %v1368 = vtanh.pop %v1352
    %v1369 = vtanh.pop %v1353
    %v1370 = vtanh.pop %v1354
    %v1371 = vtanh.pop %v1355
    %v1372 = vtanh.pop %v1356
    %v1373 = vtanh.pop %v1357
    %v1374 = vtanh.pop %v1358
    %v1375 = vtanh.pop %v1359
    %v1376 = vtanh.pop %v1360
    %v1377 = vtanh.pop %v1361
    %v1378 = vtanh.pop %v1362
    %v1379 = vtanh.pop %v1363
    %v1380 = vtanh.pop %v1364
    %v1381 = vtanh.pop %v1365
    %v1382 = vtanh.pop %v1366
    %v1383 = vmul.f32 %v1367, 6.0
    %v1384 = vmul.f32 %v1368, 6.0
    %v1385 = vmul.f32 %v1369, 6.0
    %v1386 = vmul.f32 %v1370, 6.0
    %v1387 = vmul.f32 %v1371, 6.0
    %v1388 = vmul.f32 %v1372, 6.0
    %v1389 = vmul.f32 %v1373, 6.0
    %v1390 = vmul.f32 %v1374, 6.0
    %v1391 = vmul.f32 %v1375, 6.0
    %v1392 = vmul.f32 %v1376, 6.0
    %v1393 = vmul.f32 %v1377, 6.0
    %v1394 = vmul.f32 %v1378, 6.0
    %v1395 = vmul.f32 %v1379, 6.0
    %v1396 = vmul.f32 %v1380, 6.0
    %v1397 = vmul.f32 %v1381, 6.0
    %v1398 = vmul.f32 %v1382, 6.0
    %1415 = vset.pattern.permute.xlu0 0
    %1416 = vperm.xlu0 %1415, %v1383
    %v1417 = vpop.permute.xlu0 %1416
    %1418 = vset.pattern.permute.xlu0 0
    %1419 = vperm.xlu0 %1418, %v1384
    %v1420 = vpop.permute.xlu0 %1419
    %1421 = vset.pattern.permute.xlu0 0
    %1422 = vperm.xlu0 %1421, %v1385
    %v1423 = vpop.permute.xlu0 %1422
    %1424 = vset.pattern.permute.xlu0 0
    %1425 = vperm.xlu0 %1424, %v1386
    %v1426 = vpop.permute.xlu0 %1425
    %1427 = vset.pattern.permute.xlu0 0
    %1428 = vperm.xlu0 %1427, %v1387
    %v1429 = vpop.permute.xlu0 %1428
    %1430 = vset.pattern.permute.xlu0 0
    %1431 = vperm.xlu0 %1430, %v1388
    %v1432 = vpop.permute.xlu0 %1431
    %1433 = vset.pattern.permute.xlu0 0
    %1434 = vperm.xlu0 %1433, %v1389
    %v1435 = vpop.permute.xlu0 %1434
    %1436 = vset.pattern.permute.xlu0 0
    %1437 = vperm.xlu0 %1436, %v1390
    %v1438 = vpop.permute.xlu0 %1437
    %1439 = vset.pattern.permute.xlu0 0
    %1440 = vperm.xlu0 %1439, %v1391
    %v1441 = vpop.permute.xlu0 %1440
    %1442 = vset.pattern.permute.xlu0 0
    %1443 = vperm.xlu0 %1442, %v1392
    %v1444 = vpop.permute.xlu0 %1443
    %1445 = vset.pattern.permute.xlu0 0
    %1446 = vperm.xlu0 %1445, %v1393
    %v1447 = vpop.permute.xlu0 %1446
    %1448 = vset.pattern.permute.xlu0 0
    %1449 = vperm.xlu0 %1448, %v1394
    %v1450 = vpop.permute.xlu0 %1449
    %1451 = vset.pattern.permute.xlu0 0
    %1452 = vperm.xlu0 %1451, %v1395
    %v1453 = vpop.permute.xlu0 %1452
    %1454 = vset.pattern.permute.xlu0 0
    %1455 = vperm.xlu0 %1454, %v1396
    %v1456 = vpop.permute.xlu0 %1455
    %1457 = vset.pattern.permute.xlu0 0
    %1458 = vperm.xlu0 %1457, %v1397
    %v1459 = vpop.permute.xlu0 %1458
    %1460 = vset.pattern.permute.xlu0 0
    %1461 = vperm.xlu0 %1460, %v1398
    %v1462 = vpop.permute.xlu0 %1461
    %v1463 = vlaneseq
    %v1464 = vshrl.u32 %v1463, 7
    %v1465 = vsub.s32 %v242, %v1464
    %v1466 = vrot.slane %v1417, %v1465
    %v1467 = vadd.s32 %v242, 4294967288
    %v1468 = vlaneseq
    %v1469 = vshrl.u32 %v1468, 7
    %v1470 = vsub.s32 %v1467, %v1469
    %v1471 = vrot.slane %v1420, %v1470
    %vm1472 = vcmask 130112
    %v1473 = vsel %vm1472, %v1471, %v1466
    %v1474 = vlaneseq
    %v1475 = vshrl.u32 %v1474, 7
    %v1476 = vsub.s32 %v242, %v1475
    %v1477 = vrot.slane %v1423, %v1476
    %v1478 = vlaneseq
    %v1479 = vshrl.u32 %v1478, 7
    %v1480 = vsub.s32 %v1467, %v1479
    %v1481 = vrot.slane %v1426, %v1480
    %v1482 = vsel %vm1472, %v1481, %v1477
    %v1483 = vlaneseq
    %v1484 = vshrl.u32 %v1483, 7
    %v1485 = vsub.s32 %v242, %v1484
    %v1486 = vrot.slane %v1429, %v1485
    %v1487 = vlaneseq
    %v1488 = vshrl.u32 %v1487, 7
    %v1489 = vsub.s32 %v1467, %v1488
    %v1490 = vrot.slane %v1432, %v1489
    %v1491 = vsel %vm1472, %v1490, %v1486
    %v1492 = vlaneseq
    %v1493 = vshrl.u32 %v1492, 7
    %v1494 = vsub.s32 %v242, %v1493
    %v1495 = vrot.slane %v1435, %v1494
    %v1496 = vlaneseq
    %v1497 = vshrl.u32 %v1496, 7
    %v1498 = vsub.s32 %v1467, %v1497
    %v1499 = vrot.slane %v1438, %v1498
    %v1500 = vsel %vm1472, %v1499, %v1495
    %v1501 = vlaneseq
    %v1502 = vshrl.u32 %v1501, 7
    %v1503 = vsub.s32 %v242, %v1502
    %v1504 = vrot.slane %v1441, %v1503
    %v1505 = vlaneseq
    %v1506 = vshrl.u32 %v1505, 7
    %v1507 = vsub.s32 %v1467, %v1506
    %v1508 = vrot.slane %v1444, %v1507
    %v1509 = vsel %vm1472, %v1508, %v1504
    %v1510 = vlaneseq
    %v1511 = vshrl.u32 %v1510, 7
    %v1512 = vsub.s32 %v242, %v1511
    %v1513 = vrot.slane %v1447, %v1512
    %v1514 = vlaneseq
    %v1515 = vshrl.u32 %v1514, 7
    %v1516 = vsub.s32 %v1467, %v1515
    %v1517 = vrot.slane %v1450, %v1516
    %v1518 = vsel %vm1472, %v1517, %v1513
    %v1519 = vlaneseq
    %v1520 = vshrl.u32 %v1519, 7
    %v1521 = vsub.s32 %v242, %v1520
    %v1522 = vrot.slane %v1453, %v1521
    %v1523 = vlaneseq
    %v1524 = vshrl.u32 %v1523, 7
    %v1525 = vsub.s32 %v1467, %v1524
    %v1526 = vrot.slane %v1456, %v1525
    %v1527 = vsel %vm1472, %v1526, %v1522
    %v1528 = vlaneseq
    %v1529 = vshrl.u32 %v1528, 7
    %v1530 = vsub.s32 %v242, %v1529
    %v1531 = vrot.slane %v1459, %v1530
    %v1532 = vlaneseq
    %v1533 = vshrl.u32 %v1532, 7
    %v1534 = vsub.s32 %v1467, %v1533
    %v1535 = vrot.slane %v1462, %v1534
    %v1536 = vsel %vm1472, %v1535, %v1531
    %vm1537 = vcmask 1041409
    %v1538 = vsel %vm1537, %v1482, %v1473
    %vm1539 = vcmask 1042434
    %v1540 = vsel %vm1539, %v1491, %v1538
    %vm1541 = vcmask 1043459
    %v1542 = vsel %vm1541, %v1500, %v1540
    %vm1543 = vcmask 1044484
    %v1544 = vsel %vm1543, %v1509, %v1542
    %vm1545 = vcmask 1045509
    %v1546 = vsel %vm1545, %v1518, %v1544
    %vm1547 = vcmask 1046534
    %v1548 = vsel %vm1547, %v1527, %v1546
    %vm1549 = vcmask 1047559
    %v1550 = vsel %vm1549, %v1536, %v1548
    %vm1552 = vcmask 130048
    %v1553 = vsel %vm1552, %v1550, 0.0
    %1554 = vst [vmem:[#allocation2] sm:$0xff] %v1553
    // Predicated region
    $region38: #{tpu_custom_call.1} parent=1 // pred_check
      _
    $region39: #{tpu_custom_call.1} parent=1 // pred_check_branch
      %1556 = sbr.rel (0) target = $region41
    $region40: #{tpu_custom_call.1} parent=1 // pred_region
      %s1558 = ssub.s32 128, 128
      %1559 = vsyncadd [#allocation3], %s1558
      %s1561 = sshll.u32 [#allocation2], 4
      %s1562 = int_to_ptr.vmem [resolvable:$true] %s1561
      %1564 = dma.vmem_to_hbm [thread:$0]  %s1562, 128, %s9, [#allocation3]
    $region41: #{tpu_custom_call.1} parent=1 // pred_fallthru
      _
    // Predicated region
    $region42: #{tpu_custom_call.1} parent=1 // pred_check
      _
    $region43: #{tpu_custom_call.1} parent=1 // pred_check_branch
      %1566 = sbr.rel (0) target = $region45
    $region44: #{tpu_custom_call.1} parent=1 // pred_region
      %1567 = dma.done [#allocation3], 128
    $region45: #{tpu_custom_call.1} parent=1 // pred_fallthru
      _
    %1568 = vsyncpa [#allocation3], 1

</llo_original>
